<compile_context>
chip_gen: v5e
topology: v5e:2x2
jax: 0.10.0
libtpu: 0.0.40
codegen_flags: <defaults>
</compile_context>

<pallas_src>
import functools

import numpy as np
import jax
import jax.numpy as jnp
from jax.experimental import pallas as pl
from jax.experimental.pallas import tpu as pltpu


ACT_DTYPE = jnp.bfloat16   # activation stream dtype in HBM; accumulation is f32
_FORCE_TILE = None         # set in __main__ to exercise the tiled path at toy lengths


def _pick_tile(C, override=None):
    """Per-layer adaptive time tile: ~512 KiB bf16 x-block, clamped to [256, 4096]
    lanes (multiple of 128).  Narrow tail layers get big tiles (fewer grid steps,
    small halo overhead); wide head layers stay inside the scoped-VMEM budget."""
    if override is not None:
        return int(override)
    if _FORCE_TILE is not None:
        return int(_FORCE_TILE)
    tile = (512 * 1024) // max(2 * C, 1)
    tile = int(min(4096, max(256, tile)))
    return (tile // 128) * 128


# ----------------------------------------------------------------------------
# Pallas kernel: fused multi-stream, multi-tap channel-mixing conv.
# ----------------------------------------------------------------------------
def _tapmix_kernel(*refs, streams, slope, tanh_out, n_skip, out_scale,
                   tiled, t_in, tile):
    """o = scale*([tanh](sum_{s,k} W_{s,k} @ leaky(x_s)[:, k*dil:...] + b) + skips).

    Boundary handling is in-kernel: per stream with halo>0 the call supplies one
    extra 128-lane block on each side of the current tile; columns outside the
    real [0, t_in) range are masked to zero (the conv's zero padding)."""
    it = iter(refs)

    wins = []
    for (K, dil, pad_l, pad_r) in streams:
        cur = next(it)[0]                                  # (C, L)
        halo = (K - 1) * dil
        if halo > 0:
            if tiled:
                left = next(it)[0]                         # (C, 128)
                right = next(it)[0]                        # (C, 128)
                parts = []
                if pad_l:
                    parts.append(left[:, 128 - pad_l:])
                parts.append(cur)
                if pad_r:
                    parts.append(right[:, :pad_r])
                win = jnp.concatenate(parts, axis=1) if len(parts) > 1 else cur
                t0 = pl.program_id(1) * tile
                col = (jax.lax.broadcasted_iota(jnp.int32, (1, win.shape[1]), 1)
                       + (t0 - pad_l))
                win = jnp.where((col >= 0) & (col < t_in), win,
                                jnp.zeros_like(win))
            else:
                C = cur.shape[0]
                parts = []
                if pad_l:
                    parts.append(jnp.zeros((C, pad_l), cur.dtype))
                parts.append(cur)
                if pad_r:
                    parts.append(jnp.zeros((C, pad_r), cur.dtype))
                win = jnp.concatenate(parts, axis=1) if len(parts) > 1 else cur
        else:
            win = cur
        if slope is not None:                              # fused LeakyReLU (once/elem)
            win = jnp.where(win >= 0, win, slope * win)
        wins.append(win)

    w_ref = next(it)                                       # (KT, Cout, Cin)
    b_ref = next(it)                                       # (Cout, 1) f32
    skip_refs = [next(it) for _ in range(n_skip)]
    o_ref = next(it)                                       # (1, Cout, L)

    L = o_ref.shape[-1]
    cin = w_ref.shape[2]
    acc = None
    ti = 0
    for (K, dil, pad_l, pad_r), win in zip(streams, wins):
        for k in range(K):
            sub = win[:, k * dil: k * dil + L]
            wk = w_ref[ti]
            if cin == 1:
                # Narrow-input layer (emb conv): VPU broadcast multiply instead of
                # a near-empty MXU tile.  TODO(synk): same routing for Cout==1.
                part = wk.astype(jnp.float32) * sub.astype(jnp.float32)
            else:
                part = jnp.dot(wk, sub, preferred_element_type=jnp.float32)
            acc = part if acc is None else acc + part
            ti += 1

    acc = acc + b_ref[...]
    if tanh_out:
        acc = jnp.tanh(acc)
    for sr in skip_refs:                                   # fused residual adds
        acc = acc + sr[0].astype(jnp.float32)
    if out_scale != 1.0:                                   # fused 1/nb average
        acc = acc * jnp.float32(out_scale)
    o_ref[0] = acc.astype(o_ref.dtype)


def _tapmix_call(xs, w, b, *, taps, t_out, slope=None, skips=(), tanh_out=False,
                 out_scale=1.0, out_dtype=None, tile_override=None):
    """Fused conv over multiple input streams.

    xs   : list of (B, C, t_out) streams (NOT pre-padded; boundaries in-kernel).
    taps : list of (K, dilation, pad_left) per stream.
    w    : (sum_K, Cout, C) tap-major channel-mixing weights.
    b    : (Cout, 1) bias (f32).
    """
    B, C, T_in = xs[0].shape
    for x in xs:
        assert x.shape == (B, C, T_in)
    assert T_in == t_out
    KT, Cout, Cw = w.shape
    assert Cw == C and KT == sum(k for (k, _, _) in taps)

    compute_dtype = xs[0].dtype
    out_dtype = out_dtype if out_dtype is not None else compute_dtype
    w = w.astype(compute_dtype)
    b = b.astype(jnp.float32)
    skips = list(skips)

    tile = _pick_tile(C, tile_override)
    if t_out <= tile:
        tile, n_t, tiled = t_out, 1, False
    else:
        n_t, tiled = pl.cdiv(t_out, tile), True
        assert tile % 128 == 0

    nblk = tile // 128 if tiled else 0
    n128 = pl.cdiv(T_in, 128)

    streams, in_specs, operands = [], [], []
    for x, (K, dil, pad_l) in zip(xs, taps):
        halo = (K - 1) * dil
        pad_r = halo - pad_l
        # TODO(synk): fall back to an XLA pad if a production kernel/dilation combo
        # ever exceeds one 128-lane halo block per side.
        assert 0 <= pad_l <= 128 and 0 <= pad_r <= 128, (pad_l, pad_r)
        streams.append((K, dil, pad_l, pad_r))
        in_specs.append(pl.BlockSpec((1, C, tile), lambda bb, tt: (bb, 0, tt)))
        operands.append(x)
        if tiled and halo > 0:
            in_specs.append(pl.BlockSpec(
                (1, C, 128),
                lambda bb, tt, nblk=nblk: (bb, 0, jnp.maximum(tt * nblk - 1, 0))))
            operands.append(x)
            in_specs.append(pl.BlockSpec(
                (1, C, 128),
                lambda bb, tt, nblk=nblk, n128=n128:
                    (bb, 0, jnp.minimum((tt + 1) * nblk, n128 - 1))))
            operands.append(x)

    # Weights/bias: constant block index -> not re-fetched across grid steps.
    # TODO(synk): pipeline_mode=pl.Buffered(1) to also single-buffer their VMEM.
    in_specs.append(pl.BlockSpec(w.shape, lambda bb, tt: (0, 0, 0)))
    operands.append(w)
    in_specs.append(pl.BlockSpec(b.shape, lambda bb, tt: (0, 0)))
    operands.append(b)
    for sk in skips:
        assert sk.shape == (B, Cout, t_out)
        in_specs.append(pl.BlockSpec((1, Cout, tile), lambda bb, tt: (bb, 0, tt)))
        operands.append(sk)

    kernel = functools.partial(
        _tapmix_kernel, streams=tuple(streams), slope=slope, tanh_out=tanh_out,
        n_skip=len(skips), out_scale=float(out_scale), tiled=tiled,
        t_in=T_in, tile=tile)

    # Explicit VMEM budget (double-buffered blocks + constant weights + f32 acc).
    esz = jnp.dtype(compute_dtype).itemsize
    block_bytes = 0
    for (K, dil, pad_l, pad_r) in streams:
        block_bytes += C * tile * esz
        if tiled and (K - 1) * dil > 0:
            block_bytes += 2 * C * 128 * esz
    block_bytes += (len(skips) + 1) * Cout * tile * esz
    est = 2 * block_bytes + 2 * (w.size * esz + b.size * 4) + 2 * Cout * tile * 4
    vmem_budget = int(min(64 << 20, max(24 << 20, 3 * est)))

    return pl.pallas_call(
        kernel,
        out_shape=jax.ShapeDtypeStruct((B, Cout, t_out), out_dtype),
        grid=(B, n_t),
        in_specs=in_specs,
        out_specs=pl.BlockSpec((1, Cout, tile), lambda bb, tt: (bb, 0, tt)),
        # Time axis is "parallel" so the grid can shard across the 2 v7x
        # TensorCores even for batch==1 inference.
        compiler_params=pltpu.CompilerParams(
            dimension_semantics=("parallel", "parallel"),
            vmem_limit_bytes=vmem_budget),
    )(*operands)


# ----------------------------------------------------------------------------
# Conv wrappers (index glue in plain JAX, all math in the fused Pallas kernel).
# ----------------------------------------------------------------------------
def conv1d(x, w, b, *, K, dilation=1, padding=0, slope=None, skip=None,
           tanh_out=False, out_scale=1.0, dtype=None, tile_override=None):
    """nn.Conv1d (stride 1), fused with LeakyReLU / bias / residual add(s) / Tanh
    / output scale.  Boundary zero padding is handled inside the kernel."""
    dtype = dtype if dtype is not None else x.dtype
    x = x.astype(dtype)
    skips = []
    if skip is not None:
        skips = list(skip) if isinstance(skip, (list, tuple)) else [skip]
    t_out = x.shape[2] + 2 * padding - (K - 1) * dilation
    return _tapmix_call([x], w, b, taps=[(K, dilation, padding)], t_out=t_out,
                        slope=slope, skips=skips, tanh_out=tanh_out,
                        out_scale=out_scale, out_dtype=dtype,
                        tile_override=tile_override)


def downsample_conv1d(x, w3, b, *, stride, slope=None, dtype=None,
                      tile_override=None):
    """nn.Conv1d(kernel=2*stride, stride=stride, padding=stride-1) as a polyphase
    3-tap stride-1 conv on the phase-folded input (no strided HBM views)."""
    dtype = dtype if dtype is not None else x.dtype
    B, C, T = x.shape
    assert T % stride == 0
    xf = (x.astype(dtype).reshape(B, C, T // stride, stride)
          .transpose(0, 3, 1, 2).reshape(B, stride * C, T // stride))
    return _tapmix_call([xf], w3, b, taps=[(3, 1, 1)], t_out=T // stride,
                        slope=slope, out_dtype=dtype, tile_override=tile_override)


def conv_transpose1d(x, w3, b, *, stride, slope=None, dtype=None,
                     tile_override=None):
    """nn.ConvTranspose1d (kernel=2*stride) as a polyphase 3-tap stride-1 conv on
    the un-upsampled input followed by a phase interleave (no zero stuffing)."""
    dtype = dtype if dtype is not None else x.dtype
    B, Cin, T = x.shape
    cout = w3.shape[1] // stride
    y = _tapmix_call([x.astype(dtype)], w3, b, taps=[(3, 1, 1)], t_out=T,
                     slope=slope, out_dtype=dtype, tile_override=tile_override)
    # TODO(synk): fuse this phase interleave (and the subsequent residual add)
    # into the kernel epilogue as a lane-dense (cout, stride*tile) store.
    return (y.reshape(B, stride, cout, T).transpose(0, 2, 3, 1)
             .reshape(B, cout, T * stride))


def _convT_polyphase_weights(w_t, stride):
    """torch ConvTranspose1d weight (Cin, Cout, 2s) -> (3, s*Cout, Cin) tap-major,
    for padding = s//2 + s%2, output_padding = s%2 (the SiFiGAN configuration)."""
    cin, cout, kk = w_t.shape
    assert kk == 2 * stride
    p = stride // 2 + stride % 2
    taps = [[], [], []]
    for q in range(stride):
        u = q + p
        r, c = u % stride, u // stride
        w_lo = w_t[:, :, r + stride].T
        w_hi = w_t[:, :, r].T
        z = jnp.zeros_like(w_lo)
        row = [w_lo, w_hi, z] if c == 0 else [z, w_lo, w_hi]
        for j in range(3):
            taps[j].append(row[j])
    return jnp.stack([jnp.concatenate(t, axis=0) for t in taps], axis=0)


def _downsample_polyphase_weights(w, stride):
    """torch Conv1d weight (Cout, Cin, 2s) with stride=s, padding=s-1 ->
    (3, Cout, s*Cin) for a 3-tap stride-1 conv on the phase-folded input."""
    cout, cin, kk = w.shape
    s = stride
    assert kk == 2 * s
    z = jnp.zeros((cout, cin), w.dtype)
    t0, t1, t2 = [], [], []
    for r in range(s):
        t0.append(w[:, :, r - 1] if r >= 1 else z)
        t1.append(w[:, :, r + s - 1])
        t2.append(w[:, :, 2 * s - 1] if r == 0 else z)
    return jnp.stack([jnp.concatenate(t, axis=1) for t in (t0, t1, t2)], axis=0)


def adaptive_conv1d(x, d, dilation, w3, b, slope):
    """AdaptiveConv1d: pitch-dependent gather (XLA glue) + three accumulating
    1x1 convs fused in one kernel (no (B, 3C, T) concat through HBM)."""
    B, C, T = x.shape
    dil = jnp.maximum(jnp.floor(d * dilation), 1.0).astype(jnp.int32)     # (B,1,T)
    idx = jnp.arange(T, dtype=jnp.int32).reshape(1, 1, T)
    idxP = jnp.abs(idx - dil) % T
    idxF = idx + dil
    idxF = jnp.where(idxF >= T, T - (idxF % T) - 1, idxF)  # torch negative-index wrap
    gP = jnp.take_along_axis(x, jnp.broadcast_to(idxP, (B, C, T)), axis=2)
    gF = jnp.take_along_axis(x, jnp.broadcast_to(idxF, (B, C, T)), axis=2)
    # TODO(synk): move the gather in-kernel (scalar-prefetched per-frame dilations
    # against a max-dilation halo block) to drop the two XLA gather passes.
    return _tapmix_call([gP, x, gF], w3, b, taps=[(1, 1, 0)] * 3, t_out=T,
                        slope=slope, out_dtype=x.dtype)


# ----------------------------------------------------------------------------
# Residual blocks (residual adds fused into the last conv of each layer).
# ----------------------------------------------------------------------------
def source_resblock(x, d, blk, slope, rb_ks):
    for p in blk:
        xt = adaptive_conv1d(x, d, p['dilation'], p['ada_w'], p['ada_b'], slope)
        x = conv1d(xt, p['c2_w'], p['c2_b'], K=rb_ks, padding=(rb_ks - 1) // 2,
                   slope=slope, skip=x)
    return x


# ----------------------------------------------------------------------------
# Source excitation helpers (small glue, plain JAX).
# ----------------------------------------------------------------------------
def generate_sine(f0, hop, sample_rate, key):
    # TODO(synk): the reference accumulates phase in float64; float32 cumsum here.
    B, _, T = f0.shape
    f0_up = jnp.repeat(f0.astype(jnp.float32), hop, axis=-1)     # nearest interp
    vuv = (f0_up > 0).astype(jnp.float32)
    phase = 2.0 * jnp.pi * jnp.cumsum(f0_up / sample_rate, axis=-1)
    noise = jax.random.normal(key, (B, 1, T * hop), jnp.float32)
    sine = 0.1 * vuv * jnp.cos(phase) + 0.03 * noise
    return jnp.where(jnp.all(f0 == 0.0), noise, sine)            # all-unvoiced fallback


def dilated_factor(f0, scales, sample_rate, dense_factors):
    init_sr = sample_rate // int(np.prod(scales))
    outs = []
    for df, cp in zip(dense_factors, np.cumprod(scales)):
        sr_i = init_sr * int(cp)
        safe = jnp.where(f0 > 0, f0, 1.0)
        dil = jnp.where(f0 > 0, sr_i / (df * safe), 1.0)
        outs.append(jnp.repeat(dil, int(cp), axis=-1))
    return outs


# ----------------------------------------------------------------------------
# Pure-jnp references (direct definitions) used for self-checking the kernels.
# ----------------------------------------------------------------------------
def _ref_conv1d(x, w, b, K, stride=1, dilation=1, padding=0, slope=None):
    if slope is not None:
        x = jnp.where(x >= 0, x, slope * x)
    xp = jnp.pad(x, ((0, 0), (0, 0), (padding, padding)))
    t_out = (x.shape[2] + 2 * padding - dilation * (K - 1) - 1) // stride + 1
    acc = 0.0
    for k in range(K):
        xs = xp[:, :, k * dilation: k * dilation + (t_out - 1) * stride + 1: stride]
        acc = acc + jnp.einsum('oi,bit->bot', w[:, :, k], xs)
    return acc + b.reshape(1, -1, 1)


def _ref_conv_transpose1d(x, w_t, b, stride, padding, output_padding, slope=None):
    if slope is not None:
        x = jnp.where(x >= 0, x, slope * x)
    B, Cin, T = x.shape
    Cout, K = w_t.shape[1], w_t.shape[2]
    full = jnp.zeros((B, Cout, (T - 1) * stride + K + output_padding), jnp.float32)
    for k in range(K):
        contrib = jnp.einsum('io,bit->bot', w_t[:, :, k], x)
        full = full.at[:, :, k: k + (T - 1) * stride + 1: stride].add(contrib)
    l_out = (T - 1) * stride - 2 * padding + K + output_padding
    return full[:, :, padding: padding + l_out] + b.reshape(1, -1, 1)


def _self_check():
    """Validate every fused Pallas conv path (f32) against direct jnp references."""
    keys = iter(jax.random.split(jax.random.PRNGKey(123), 40))
    B, f32 = 2, jnp.float32

    def tw(w):      # torch (Cout, Cin, K) -> kernel (K, Cout, Cin)
        return jnp.transpose(w, (2, 0, 1))

    def close(a, b):
        np.testing.assert_allclose(np.asarray(a), np.asarray(b),
                                   rtol=1e-2, atol=1e-2)

    # 1) tiled dilated conv: in-kernel halo blocks, partial last tile, fused
    #    LeakyReLU / bias / residual add.
    Cin, Cout, K, dil, T = 16, 24, 7, 3, 333
    pad = (K - 1) // 2 * dil
    x = jax.random.normal(next(keys), (B, Cin, T), f32)
    w = 0.1 * jax.random.normal(next(keys), (Cout, Cin, K), f32)
    b = 0.1 * jax.random.normal(next(keys), (Cout, 1), f32)
    sk = jax.random.normal(next(keys), (B, Cout, T), f32)
    got = conv1d(x, tw(w), b, K=K, dilation=dil, padding=pad, slope=0.1,
                 skip=sk, dtype=f32, tile_override=128)
    close(got, _ref_conv1d(x, w, b, K=K, dilation=dil, padding=pad, slope=0.1) + sk)

    # 2) non-tiled conv with two fused skips + fused output scale (filter net).
    Cin, Cout, K, dil, T = 12, 10, 3, 2, 60
    x = jax.random.normal(next(keys), (B, Cin, T), f32)
    w = 0.1 * jax.random.normal(next(keys), (Cout, Cin, K), f32)
    b = 0.1 * jax.random.normal(next(keys), (Cout, 1), f32)
    s1 = jax.random.normal(next(keys), (B, Cout, T), f32)
    s2 = jax.random.normal(next(keys), (B, Cout, T), f32)
    got = conv1d(x, tw(w), b, K=K, dilation=dil, padding=2, slope=0.1,
                 skip=[s1, s2], out_scale=0.25, dtype=f32)
    close(got, (_ref_conv1d(x, w, b, K=K, dilation=dil, padding=2, slope=0.1)
                + s1 + s2) * 0.25)

    # 3) output-conv style: Cout=1, fused Tanh, tiled.
    Cin, T = 8, 200
    x = jax.random.normal(next(keys), (B, Cin, T), f32)
    w = 0.1 * jax.random.normal(next(keys), (1, Cin, 7), f32)
    b = 0.1 * jax.random.normal(next(keys), (1, 1), f32)
    got = conv1d(x, tw(w), b, K=7, padding=3, slope=0.1, tanh_out=True,
                 dtype=f32, tile_override=128)
    close(got, jnp.tanh(_ref_conv1d(x, w, b, K=7, padding=3, slope=0.1)))

    # 4) emb-style Cin==1 (VPU broadcast path), tiled.
    T = 300
    x = jax.random.normal(next(keys), (B, 1, T), f32)
    w = 0.1 * jax.random.normal(next(keys), (6, 1, 7), f32)
    b = 0.1 * jax.random.normal(next(keys), (6, 1), f32)
    got = conv1d(x, tw(w), b, K=7, padding=3, dtype=f32, tile_override=128)
    close(got, _ref_conv1d(x, w, b, K=7, padding=3))

    # 5) polyphase ConvTranspose1d, even and odd stride.
    for s, (Ci2, Co2, T2) in ((2, (12, 10, 300)), (3, (8, 6, 48))):
        wt = 0.1 * jax.random.normal(next(keys), (Ci2, Co2, 2 * s), f32)
        bt = 0.1 * jax.random.normal(next(keys), (Co2, 1), f32)
        xt = jax.random.normal(next(keys), (B, Ci2, T2), f32)
        got = conv_transpose1d(xt, _convT_polyphase_weights(wt, s),
                               jnp.tile(bt, (s, 1)), stride=s, slope=0.1, dtype=f32)
        close(got, _ref_conv_transpose1d(xt, wt, bt, s, s // 2 + s % 2, s % 2,
                                         slope=0.1))

    # 6) polyphase strided downsample conv (stride 2 and 3).
    for s, (Ci3, Co3, T3) in ((2, (8, 12, 64)), (3, (6, 9, 66))):
        x3 = jax.random.normal(next(keys), (B, Ci3, T3), f32)
        w3 = 0.1 * jax.random.normal(next(keys), (Co3, Ci3, 2 * s), f32)
        b3 = 0.1 * jax.random.normal(next(keys), (Co3, 1), f32)
        got = downsample_conv1d(x3, _downsample_polyphase_weights(w3, s), b3,
                                stride=s, slope=0.1, dtype=f32)
        close(got, _ref_conv1d(x3, w3, b3, K=2 * s, stride=s, padding=s - 1,
                               slope=0.1))

    # 7) adaptive-style multi-stream 1x1 kernel (three accumulating dots), tiled.
    C, C2, T = 16, 20, 300
    xs = [jax.random.normal(next(keys), (B, C, T), f32) for _ in range(3)]
    wm = 0.1 * jax.random.normal(next(keys), (3, C2, C), f32)
    bm = 0.1 * jax.random.normal(next(keys), (C2, 1), f32)
    got = _tapmix_call(xs, wm, bm, taps=[(1, 1, 0)] * 3, t_out=T, slope=0.1,
                       out_dtype=f32, tile_override=128)
    lk = lambda v: jnp.where(v >= 0, v, 0.1 * v)
    want = sum(jnp.einsum('oi,bit->bot', wm[j], lk(xs[j])) for j in range(3))
    close(got, want + bm.reshape(1, -1, 1))


# ----------------------------------------------------------------------------
# Parameter init (deterministic, synthetic: N(0, 0.01) like reset_parameters),
# with all tap-folding / polyphase weight transforms done once here.
# ----------------------------------------------------------------------------
def init_params(key, cfg, dtype=ACT_DTYPE):
    keys = iter(jax.random.split(key, 1024))

    def norm(shape):
        return 0.01 * jax.random.normal(next(keys), shape, jnp.float32)

    def conv_w(cout, cin, k):            # torch (Cout, Cin, K) -> (K, Cout, Cin)
        return jnp.transpose(norm((cout, cin, k)), (2, 0, 1)).astype(dtype)

    def bias(cout):
        return norm((cout, 1))           # biases stay f32 (added on the f32 acc)

    ch, ks = cfg['channels'], cfg['kernel_size']
    scales, kss = cfg['upsample_scales'], cfg['upsample_kernel_sizes']
    nu = len(scales)
    for s_, k_ in zip(scales, kss):
        assert k_ == 2 * s_, "polyphase up/down-sampler assumes kernel == 2*stride"

    P = {}
    P['input_conv'] = (conv_w(ch, cfg['in_channels'], ks), bias(ch))
    P['emb'] = (conv_w(ch // 2 ** nu, 1, ks), bias(ch // 2 ** nu))
    P['output_conv'] = (conv_w(cfg['out_channels'], ch // 2 ** nu, ks),
                        bias(cfg['out_channels']))

    P['sn_up'], P['fn_up'] = [], []
    for i in range(nu):
        cin, cout, s_ = ch // 2 ** i, ch // 2 ** (i + 1), scales[i]
        for name in ('sn_up', 'fn_up'):
            w3 = _convT_polyphase_weights(norm((cin, cout, 2 * s_)), s_).astype(dtype)
            P[name].append((w3, jnp.tile(bias(cout), (s_, 1)), s_))

    P['sn_down'], P['fn_down'] = [], []
    for i in reversed(range(1, nu)):
        cin, cout, s_ = ch // 2 ** (i + 1), ch // 2 ** i, scales[i]
        for name in ('sn_down', 'fn_down'):
            w3 = _downsample_polyphase_weights(norm((cout, cin, 2 * s_)),
                                               s_).astype(dtype)
            P[name].append((w3, bias(cout), s_))

    P['sn_blocks'] = []
    for i in range(nu):
        cch = ch // 2 ** (i + 1)
        blk = []
        for dln in cfg['sn_dilations'][i]:
            blk.append({'dilation': int(dln),
                        'ada_w': jnp.stack([norm((cch, cch)) for _ in range(3)],
                                           axis=0).astype(dtype),   # past|center|future
                        'ada_b': bias(cch),                         # only conv 0 has bias
                        'c2_w': conv_w(cch, cch, cfg['sn_kernel_size']),
                        'c2_b': bias(cch)})
        P['sn_blocks'].append(blk)

    P['fn_blocks'] = []
    for i in range(nu):
        cch = ch // 2 ** (i + 1)
        for j, k in enumerate(cfg['fn_kernel_sizes']):
            P['fn_blocks'].append(
                [{'dilation': int(dln), 'w': conv_w(cch, cch, k), 'b': bias(cch)}
                 for dln in cfg['fn_dilations'][j]])
    return P


# ----------------------------------------------------------------------------
# Full SiFiGAN forward.
# ----------------------------------------------------------------------------
def sifigan_forward(params, cfg, c, f0, noise_key):
    scales = cfg['upsample_scales']
    nu = len(scales)
    hop = int(np.prod(scales))
    slope, ks = cfg['slope'], cfg['kernel_size']
    same = (ks - 1) // 2

    # ---- source excitation embedding ----
    sine = generate_sine(f0, hop, cfg['sample_rate'], noise_key).astype(ACT_DTYPE)
    x = conv1d(sine, *params['emb'], K=ks, padding=same)
    embs = [x]
    for (w3, b3, st) in params['sn_down']:
        x = downsample_conv1d(x, w3, b3, stride=st, slope=slope)
        embs.append(x)

    d = dilated_factor(f0, scales, cfg['sample_rate'], cfg['dense_factors'])

    # ---- source network ----
    c = conv1d(c.astype(ACT_DTYPE), *params['input_conv'], K=ks, padding=same)
    s = c
    for i in range(nu):
        w3, b3, st = params['sn_up'][i]
        s = conv_transpose1d(s, w3, b3, stride=st, slope=slope) + embs[-i - 1]
        s = source_resblock(s, d[i], params['sn_blocks'][i], slope,
                            cfg['sn_kernel_size'])
    s_out = conv1d(s, *params['output_conv'], K=ks, padding=same,
                   slope=slope, tanh_out=True)

    # ---- filter network ----
    embs = [s]
    for (w3, b3, st) in params['fn_down']:
        s = downsample_conv1d(s, w3, b3, stride=st, slope=slope)
        embs.append(s)
    nb = len(cfg['fn_kernel_sizes'])
    for i in range(nu):
        w3, b3, st = params['fn_up'][i]
        c = conv_transpose1d(c, w3, b3, stride=st, slope=slope) + embs[-i - 1]
        # Parallel resblock accumulation and the final 1/nb are fused into the
        # last conv of each block (extra skip operand + out_scale epilogue).
        cs = None
        for j in range(nb):
            k = cfg['fn_kernel_sizes'][j]
            blk = params['fn_blocks'][i * nb + j]
            xb = c
            for li, p in enumerate(blk):
                last = li == len(blk) - 1
                skips = [xb]
                scale = 1.0
                if last:
                    if cs is not None:
                        skips.append(cs)
                    if j == nb - 1:
                        scale = 1.0 / nb
                dln = p['dilation']
                xb = conv1d(xb, p['w'], p['b'], K=k, dilation=dln,
                            padding=(k - 1) // 2 * dln, slope=slope,
                            skip=skips, out_scale=scale)
            cs = xb
        c = cs
    x_out = conv1d(c, *params['output_conv'], K=ks, padding=same,
                   slope=slope, tanh_out=True)
    return x_out.astype(jnp.float32), s_out.astype(jnp.float32)


# ----------------------------------------------------------------------------
# Small, self-consistent configuration (satisfies upsample_kernel == 2*scale).
# ----------------------------------------------------------------------------
CFG = dict(
    in_channels=8, out_channels=1, channels=32, kernel_size=7,
    upsample_scales=(2, 2, 2, 2), upsample_kernel_sizes=(4, 4, 4, 4),
    sn_kernel_size=3,
    sn_dilations=((1,), (1, 2), (1, 2, 4), (1, 2, 4, 8)),
    fn_kernel_sizes=(3, 5, 7),
    fn_dilations=((1, 3, 5), (1, 3, 5), (1, 3, 5)),
    sample_rate=16000, dense_factors=(0.2, 1, 3, 6),
    slope=0.1,
)


if __name__ == "__main__":
    # Force a small time tile so the tiled / in-kernel-halo / masking path is
    # exercised even at toy sequence lengths (production uses _pick_tile).
    _FORCE_TILE = 128

    _self_check()

    key = jax.random.PRNGKey(0)
    k_param, k_c, k_f0, k_noise = jax.random.split(key, 4)
    params = init_params(k_param, CFG)

    B, T = 2, 16
    c = jax.random.normal(k_c, (B, CFG['in_channels'], T), jnp.float32)
    f0 = jax.random.uniform(k_f0, (B, 1, T), jnp.float32, 80.0, 400.0)

    fwd = jax.jit(lambda c_, f0_: sifigan_forward(params, CFG, c_, f0_, k_noise))
    x_out, s_out = fwd(c, f0)
    jax.block_until_ready((x_out, s_out))

    hop = int(np.prod(CFG['upsample_scales']))
    assert x_out.shape == (B, CFG['out_channels'], T * hop), x_out.shape
    assert s_out.shape == (B, CFG['out_channels'], T * hop), s_out.shape
    assert bool(jnp.all(jnp.isfinite(x_out))) and bool(jnp.all(jnp.isfinite(s_out)))
    print("KERNEL_OK")
</pallas_src>

<mosaic_0001>
module attributes {stable_mosaic.version = 11 : i64} {
  func.func @_tapmix_kernel(%arg0: i32, %arg1: i32, %arg2: memref<1x16x128xf32, #tpu.memory_space<vmem>>, %arg3: memref<1x16x128xf32, #tpu.memory_space<vmem>>, %arg4: memref<1x16x128xf32, #tpu.memory_space<vmem>>, %arg5: memref<7x24x16xf32, #tpu.memory_space<vmem>>, %arg6: memref<24x1xf32, #tpu.memory_space<vmem>>, %arg7: memref<1x24x128xf32, #tpu.memory_space<vmem>>, %arg8: memref<1x24x128xf32, #tpu.memory_space<vmem>>) attributes {dimension_semantics = [#tpu.dimension_semantics<parallel>, #tpu.dimension_semantics<parallel>], iteration_bounds = array<i64: 2, 3>, scalar_prefetch = 0 : i64, scratch_operands = 0 : i64, tpu.core_type = #tpu.core_type<tc>, window_params = [{transform_indices = @transform_0, window_bounds = array<i64: 1, 16, 128>}, {transform_indices = @transform_1, window_bounds = array<i64: 1, 16, 128>}, {transform_indices = @transform_2, window_bounds = array<i64: 1, 16, 128>}, {pipeline_mode = #tpu.pipeline_mode<synchronous>, transform_indices = @transform_3, window_bounds = array<i64: 7, 24, 16>}, {pipeline_mode = #tpu.pipeline_mode<synchronous>, transform_indices = @transform_4, window_bounds = array<i64: 24, 1>}, {transform_indices = @transform_5, window_bounds = array<i64: 1, 24, 128>}, {transform_indices = @transform_6, window_bounds = array<i64: 1, 24, 128>}]} {
    %c0 = arith.constant 0 : index
    %c0_0 = arith.constant 0 : index
    %c0_1 = arith.constant 0 : index
    %0 = vector.load %arg2[%c0, %c0_0, %c0_1] : memref<1x16x128xf32, #tpu.memory_space<vmem>>, vector<1x16x128xf32>
    %1 = vector.shape_cast %0 : vector<1x16x128xf32> to vector<16x128xf32>
    %c0_2 = arith.constant 0 : index
    %c0_3 = arith.constant 0 : index
    %c0_4 = arith.constant 0 : index
    %2 = vector.load %arg3[%c0_2, %c0_3, %c0_4] : memref<1x16x128xf32, #tpu.memory_space<vmem>>, vector<1x16x128xf32>
    %3 = vector.shape_cast %2 : vector<1x16x128xf32> to vector<16x128xf32>
    %c0_5 = arith.constant 0 : index
    %c0_6 = arith.constant 0 : index
    %c0_7 = arith.constant 0 : index
    %4 = vector.load %arg4[%c0_5, %c0_6, %c0_7] : memref<1x16x128xf32, #tpu.memory_space<vmem>>, vector<1x16x128xf32>
    %5 = vector.shape_cast %4 : vector<1x16x128xf32> to vector<16x128xf32>
    %6 = vector.extract_strided_slice %3 {offsets = [0, 119], sizes = [16, 9], strides = [1, 1]} : vector<16x128xf32> to vector<16x9xf32>
    %7 = vector.extract_strided_slice %5 {offsets = [0, 0], sizes = [16, 9], strides = [1, 1]} : vector<16x128xf32> to vector<16x9xf32>
    %8 = tpu.concatenate %6, %1, %7 in 1 : vector<16x9xf32>, vector<16x128xf32>, vector<16x9xf32> -> vector<16x146xf32>
    %c128_i32 = arith.constant 128 : i32
    %9 = arith.muli %arg1, %c128_i32 : i32
    %10 = tpu.iota {dimensions = array<i32: 1>} : vector<1x146xi32>
    %c9_i32 = arith.constant 9 : i32
    %11 = arith.subi %9, %c9_i32 : i32
    %12 = vector.broadcast %11 : i32 to vector<1x146xi32>
    %13 = arith.addi %10, %12 : vector<1x146xi32>
    %c0_i32 = arith.constant 0 : i32
    %14 = vector.broadcast %c0_i32 : i32 to vector<1x146xi32>
    %15 = arith.cmpi sge, %13, %14 : vector<1x146xi32>
    %c333_i32 = arith.constant 333 : i32
    %16 = vector.broadcast %c333_i32 : i32 to vector<1x146xi32>
    %17 = arith.cmpi slt, %13, %16 : vector<1x146xi32>
    %18 = arith.andi %15, %17 : vector<1x146xi1>
    %cst = arith.constant 0.000000e+00 : f32
    %19 = vector.broadcast %cst : f32 to vector<16x146xf32>
    %20 = vector.shape_cast %18 : vector<1x146xi1> to vector<1x146xi1>
    %21 = vector.broadcast %20 : vector<1x146xi1> to vector<16x146xi1>
    %22 = arith.select %21, %8, %19 : vector<16x146xi1>, vector<16x146xf32>
    %cst_8 = arith.constant 0.000000e+00 : f32
    %23 = vector.broadcast %cst_8 : f32 to vector<16x146xf32>
    %24 = arith.cmpf oge, %22, %23 : vector<16x146xf32>
    %cst_9 = arith.constant 1.000000e-01 : f32
    %25 = vector.broadcast %cst_9 : f32 to vector<16x146xf32>
    %26 = arith.mulf %25, %22 : vector<16x146xf32>
    %27 = arith.select %24, %22, %26 : vector<16x146xi1>, vector<16x146xf32>
    %28 = vector.extract_strided_slice %27 {offsets = [0, 0], sizes = [16, 128], strides = [1, 1]} : vector<16x146xf32> to vector<16x128xf32>
    %c0_10 = arith.constant 0 : index
    %c0_11 = arith.constant 0 : index
    %c0_12 = arith.constant 0 : index
    %29 = vector.load %arg5[%c0_10, %c0_11, %c0_12] : memref<7x24x16xf32, #tpu.memory_space<vmem>>, vector<1x24x16xf32>
    %30 = vector.shape_cast %29 : vector<1x24x16xf32> to vector<24x16xf32>
    %cst_13 = arith.constant dense<0.000000e+00> : vector<24x128xf32>
    %31 = tpu.matmul %30, %28, %cst_13 {dimension_numbers = #tpu.dot_dimension_numbers<[1], [0], [0], [1], [0, 0, 1, 1], [], []>} : vector<24x16xf32>, vector<16x128xf32>, vector<24x128xf32> -> vector<24x128xf32>
    %32 = vector.extract_strided_slice %27 {offsets = [0, 3], sizes = [16, 128], strides = [1, 1]} : vector<16x146xf32> to vector<16x128xf32>
    %c1 = arith.constant 1 : index
    %c0_14 = arith.constant 0 : index
    %c0_15 = arith.constant 0 : index
    %33 = vector.load %arg5[%c1, %c0_14, %c0_15] : memref<7x24x16xf32, #tpu.memory_space<vmem>>, vector<1x24x16xf32>
    %34 = vector.shape_cast %33 : vector<1x24x16xf32> to vector<24x16xf32>
    %cst_16 = arith.constant dense<0.000000e+00> : vector<24x128xf32>
    %35 = tpu.matmul %34, %32, %cst_16 {dimension_numbers = #tpu.dot_dimension_numbers<[1], [0], [0], [1], [0, 0, 1, 1], [], []>} : vector<24x16xf32>, vector<16x128xf32>, vector<24x128xf32> -> vector<24x128xf32>
    %36 = arith.addf %31, %35 : vector<24x128xf32>
    %37 = vector.extract_strided_slice %27 {offsets = [0, 6], sizes = [16, 128], strides = [1, 1]} : vector<16x146xf32> to vector<16x128xf32>
    %c2 = arith.constant 2 : index
    %c0_17 = arith.constant 0 : index
    %c0_18 = arith.constant 0 : index
    %38 = vector.load %arg5[%c2, %c0_17, %c0_18] : memref<7x24x16xf32, #tpu.memory_space<vmem>>, vector<1x24x16xf32>
    %39 = vector.shape_cast %38 : vector<1x24x16xf32> to vector<24x16xf32>
    %cst_19 = arith.constant dense<0.000000e+00> : vector<24x128xf32>
    %40 = tpu.matmul %39, %37, %cst_19 {dimension_numbers = #tpu.dot_dimension_numbers<[1], [0], [0], [1], [0, 0, 1, 1], [], []>} : vector<24x16xf32>, vector<16x128xf32>, vector<24x128xf32> -> vector<24x128xf32>
    %41 = arith.addf %36, %40 : vector<24x128xf32>
    %42 = vector.extract_strided_slice %27 {offsets = [0, 9], sizes = [16, 128], strides = [1, 1]} : vector<16x146xf32> to vector<16x128xf32>
    %c3 = arith.constant 3 : index
    %c0_20 = arith.constant 0 : index
    %c0_21 = arith.constant 0 : index
    %43 = vector.load %arg5[%c3, %c0_20, %c0_21] : memref<7x24x16xf32, #tpu.memory_space<vmem>>, vector<1x24x16xf32>
    %44 = vector.shape_cast %43 : vector<1x24x16xf32> to vector<24x16xf32>
    %cst_22 = arith.constant dense<0.000000e+00> : vector<24x128xf32>
    %45 = tpu.matmul %44, %42, %cst_22 {dimension_numbers = #tpu.dot_dimension_numbers<[1], [0], [0], [1], [0, 0, 1, 1], [], []>} : vector<24x16xf32>, vector<16x128xf32>, vector<24x128xf32> -> vector<24x128xf32>
    %46 = arith.addf %41, %45 : vector<24x128xf32>
    %47 = vector.extract_strided_slice %27 {offsets = [0, 12], sizes = [16, 128], strides = [1, 1]} : vector<16x146xf32> to vector<16x128xf32>
    %c4 = arith.constant 4 : index
    %c0_23 = arith.constant 0 : index
    %c0_24 = arith.constant 0 : index
    %48 = vector.load %arg5[%c4, %c0_23, %c0_24] : memref<7x24x16xf32, #tpu.memory_space<vmem>>, vector<1x24x16xf32>
    %49 = vector.shape_cast %48 : vector<1x24x16xf32> to vector<24x16xf32>
    %cst_25 = arith.constant dense<0.000000e+00> : vector<24x128xf32>
    %50 = tpu.matmul %49, %47, %cst_25 {dimension_numbers = #tpu.dot_dimension_numbers<[1], [0], [0], [1], [0, 0, 1, 1], [], []>} : vector<24x16xf32>, vector<16x128xf32>, vector<24x128xf32> -> vector<24x128xf32>
    %51 = arith.addf %46, %50 : vector<24x128xf32>
    %52 = vector.extract_strided_slice %27 {offsets = [0, 15], sizes = [16, 128], strides = [1, 1]} : vector<16x146xf32> to vector<16x128xf32>
    %c5 = arith.constant 5 : index
    %c0_26 = arith.constant 0 : index
    %c0_27 = arith.constant 0 : index
    %53 = vector.load %arg5[%c5, %c0_26, %c0_27] : memref<7x24x16xf32, #tpu.memory_space<vmem>>, vector<1x24x16xf32>
    %54 = vector.shape_cast %53 : vector<1x24x16xf32> to vector<24x16xf32>
    %cst_28 = arith.constant dense<0.000000e+00> : vector<24x128xf32>
    %55 = tpu.matmul %54, %52, %cst_28 {dimension_numbers = #tpu.dot_dimension_numbers<[1], [0], [0], [1], [0, 0, 1, 1], [], []>} : vector<24x16xf32>, vector<16x128xf32>, vector<24x128xf32> -> vector<24x128xf32>
    %56 = arith.addf %51, %55 : vector<24x128xf32>
    %57 = vector.extract_strided_slice %27 {offsets = [0, 18], sizes = [16, 128], strides = [1, 1]} : vector<16x146xf32> to vector<16x128xf32>
    %c6 = arith.constant 6 : index
    %c0_29 = arith.constant 0 : index
    %c0_30 = arith.constant 0 : index
    %58 = vector.load %arg5[%c6, %c0_29, %c0_30] : memref<7x24x16xf32, #tpu.memory_space<vmem>>, vector<1x24x16xf32>
    %59 = vector.shape_cast %58 : vector<1x24x16xf32> to vector<24x16xf32>
    %cst_31 = arith.constant dense<0.000000e+00> : vector<24x128xf32>
    %60 = tpu.matmul %59, %57, %cst_31 {dimension_numbers = #tpu.dot_dimension_numbers<[1], [0], [0], [1], [0, 0, 1, 1], [], []>} : vector<24x16xf32>, vector<16x128xf32>, vector<24x128xf32> -> vector<24x128xf32>
    %61 = arith.addf %56, %60 : vector<24x128xf32>
    %c0_32 = arith.constant 0 : index
    %c0_33 = arith.constant 0 : index
    %62 = vector.load %arg6[%c0_32, %c0_33] : memref<24x1xf32, #tpu.memory_space<vmem>>, vector<24x1xf32>
    %63 = vector.broadcast %62 : vector<24x1xf32> to vector<24x128xf32>
    %64 = arith.addf %61, %63 : vector<24x128xf32>
    %c0_34 = arith.constant 0 : index
    %c0_35 = arith.constant 0 : index
    %c0_36 = arith.constant 0 : index
    %65 = vector.load %arg7[%c0_34, %c0_35, %c0_36] : memref<1x24x128xf32, #tpu.memory_space<vmem>>, vector<1x24x128xf32>
    %66 = vector.shape_cast %65 : vector<1x24x128xf32> to vector<24x128xf32>
    %67 = arith.addf %64, %66 : vector<24x128xf32>
    %c0_37 = arith.constant 0 : index
    %c0_38 = arith.constant 0 : index
    %c0_39 = arith.constant 0 : index
    %68 = vector.load %arg8[%c0_37, %c0_38, %c0_39] : memref<1x24x128xf32, #tpu.memory_space<vmem>>, vector<1x24x128xf32>
    %69 = vector.shape_cast %68 : vector<1x24x128xf32> to vector<24x128xf32>
    %70 = vector.shape_cast %67 : vector<24x128xf32> to vector<1x24x128xf32>
    tpu.vector_store %arg8[%c0_37, %c0_38, %c0_39], %70 {strides = array<i32>} : memref<1x24x128xf32, #tpu.memory_space<vmem>>, vector<1x24x128xf32>,
    return
  }
  func.func @transform_0(%arg0: i32, %arg1: i32) -> (i32, i32, i32) {
    %c0_i32 = arith.constant 0 : i32
    %c0_i32_0 = arith.constant 0 : i32
    return %arg0, %c0_i32, %arg1 : i32, i32, i32
  }
  func.func @transform_1(%arg0: i32, %arg1: i32) -> (i32, i32, i32) {
    %c1_i32 = arith.constant 1 : i32
    %0 = arith.muli %arg1, %c1_i32 : i32
    %c1_i32_0 = arith.constant 1 : i32
    %1 = arith.subi %0, %c1_i32_0 : i32
    %c0_i32 = arith.constant 0 : i32
    %2 = arith.maxsi %1, %c0_i32 : i32
    %c0_i32_1 = arith.constant 0 : i32
    %c0_i32_2 = arith.constant 0 : i32
    return %arg0, %c0_i32_1, %2 : i32, i32, i32
  }
  func.func @transform_2(%arg0: i32, %arg1: i32) -> (i32, i32, i32) {
    %c1_i32 = arith.constant 1 : i32
    %0 = arith.addi %arg1, %c1_i32 : i32
    %c1_i32_0 = arith.constant 1 : i32
    %1 = arith.muli %0, %c1_i32_0 : i32
    %c2_i32 = arith.constant 2 : i32
    %2 = arith.minsi %1, %c2_i32 : i32
    %c0_i32 = arith.constant 0 : i32
    %c0_i32_1 = arith.constant 0 : i32
    return %arg0, %c0_i32, %2 : i32, i32, i32
  }
  func.func @transform_3(%arg0: i32, %arg1: i32) -> (i32, i32, i32) {
    %c0_i32 = arith.constant 0 : i32
    %c0_i32_0 = arith.constant 0 : i32
    %c0_i32_1 = arith.constant 0 : i32
    %c0_i32_2 = arith.constant 0 : i32
    return %c0_i32, %c0_i32_0, %c0_i32_1 : i32, i32, i32
  }
  func.func @transform_4(%arg0: i32, %arg1: i32) -> (i32, i32) {
    %c0_i32 = arith.constant 0 : i32
    %c0_i32_0 = arith.constant 0 : i32
    %c0_i32_1 = arith.constant 0 : i32
    return %c0_i32, %c0_i32_0 : i32, i32
  }
  func.func @transform_5(%arg0: i32, %arg1: i32) -> (i32, i32, i32) {
    %c0_i32 = arith.constant 0 : i32
    %c0_i32_0 = arith.constant 0 : i32
    return %arg0, %c0_i32, %arg1 : i32, i32, i32
  }
  func.func @transform_6(%arg0: i32, %arg1: i32) -> (i32, i32, i32) {
    %c0_i32 = arith.constant 0 : i32
    %c0_i32_0 = arith.constant 0 : i32
    return %arg0, %c0_i32, %arg1 : i32, i32, i32
  }
}

</mosaic_0001>

<llo_original>
// kernel: tpu_custom_call.1
$region0: #{tpu_custom_call.1}
  #allocation0 [shape = 'u32[]', space=smem, size = 0x4, offset = 0x4, fixed_abs, tag = 'smem constant byte address 0x4 - core index']
  #allocation1 [shape = 'u32[72,128]{1,0:T(1,128)}', space=vmem, size = 0x9000, scoped, tag = 'internal scratch']
  %s0 = inlined_call_operand.vmem [shape: f32[2,16,333], index: 0, kind: input, shape index: {}]
  %s1 = inlined_call_operand.hbm [shape: f32[2,16,333], index: 1, kind: input, shape index: {}]
  %s2 = inlined_call_operand.hbm [shape: f32[2,16,333], index: 2, kind: input, shape index: {}]
  %s3 = inlined_call_operand.vmem [shape: f32[7,24,16], index: 3, kind: input, shape index: {}]
  %s4 = inlined_call_operand.vmem [shape: f32[24,1], index: 4, kind: input, shape index: {}]
  %s5 = inlined_call_operand.vmem [shape: f32[2,24,333], index: 5, kind: input, shape index: {}]
  %s6 = inlined_call_operand.hbm [shape: f32[2,24,333], index: 6, kind: output, shape index: {}]
  %s7 = sld [smem:[#allocation0]]
  $region141: #{tpu_custom_call.1} parent=0
    _
  %s9 = ssub.s32 1, %s7
  %s10 = scalar_select 0, %s9, %s7
  $region1: #{tpu_custom_call.1} parent=0
    #allocation2 [shape = 'u8[16384]{0}', space=vmem, size = 0x4000, scoped, tag = 'input window, operand 0']
    #allocation3 [shape = 'u8[16384]{0}', space=vmem, size = 0x4000, scoped, tag = 'input window, operand 1']
    #allocation4 [shape = 's32[2]{0}', space=sflag, size = 0x8, scoped, tag = 'scoped memory for tpu_custom_call.1']
    #allocation5 [shape = 's32[2]{0}', space=sflag, size = 0x8, scoped, tag = 'scoped memory for tpu_custom_call.1']
    #allocation6 [shape = 'u8[16384]{0}', space=vmem, size = 0x4000, scoped, tag = 'input window, operand 2']
    #allocation7 [shape = 's32[2]{0}', space=sflag, size = 0x8, scoped, tag = 'scoped memory for tpu_custom_call.1']
    #allocation8 [shape = 'u8[24576]{0}', space=vmem, size = 0x6000, scoped, tag = 'input window, operand 5']
    #allocation9 [shape = 'u8[24576]{0}', space=vmem, size = 0x6000, scoped, tag = 'output window, operand 0']
    %11 = vsyncpa [#allocation4], 0
    %s12 = scalar_lea.sflag [#allocation4], 1
    %13 = vsyncpa %s12, 0
    %14 = vsyncpa [#allocation7], 0
    %s15 = scalar_lea.sflag [#allocation7], 1
    %16 = vsyncpa %s15, 0
    %17 = vsyncpa [#allocation5], 0
    %s18 = scalar_lea.sflag [#allocation5], 1
    %19 = vsyncpa %s18, 0
    loop: start=0, step=1, limit=8
    $region2: #{tpu_custom_call.1} parent=1 // loop_pre_header
      _
    $region3: #{tpu_custom_call.1} parent=1 // loop_header
      %s21 = sphi 0, %s25
      %p22 = scmp.ge.s32.totalorder %s21, 8
      %s28 = sphi 0, %s40
      %s29 = sphi 0, %s36
      %s30 = sphi 0, %s28
      %s31 = sphi 0, %s29
      %s32 = sphi 0, %s30
      %s33 = sphi 0, %s31
      %s45 = sphi 0, %s47
      %s48 = sphi 0, %s45
      %s49 = sphi 0, %s48
      %s65 = sphi 0, %s49
      %s79 = sphi 0, %s81
      %s82 = sphi 0, %s79
      %s83 = sphi 0, %s82
      %s99 = sphi 0, %s83
      %s113 = sphi 0, %s115
      %s116 = sphi 0, %s113
      %s117 = sphi 0, %s116
      %s133 = sphi 0, %s117
      %s137 = sphi 0, %s137
      %s139 = sphi 0, %s137
      %s140 = sphi 0, %s139
      %s154 = sphi 0, %s140
      %s158 = sphi 0, %s158
      %s160 = sphi 0, %s158
      %s161 = sphi 0, %s160
      %s175 = sphi 0, %s161
      %s183 = sphi 0, %s185
      %s186 = sphi 0, %s183
      %s187 = sphi 0, %s186
      %s203 = sphi 0, %s187
      %s211 = sphi 0, %s213
      %s214 = sphi 0, %s211
      %s215 = sphi 0, %s214
      %s231 = sphi 0, %s215
    $region4: #{tpu_custom_call.1} parent=1 // loop_header_branch
      %24 = sbr.rel (%p22) target = $region8
    $region5: #{tpu_custom_call.1} parent=1 // loop_body
      %s26 = ssub.s32 %s21, 1
      %s27 = ssub.s32 %s21, 2
      %s34 = sadd.s32 1, %s29
      %p35 = scmp.ge.s32.totalorder %s34, 3
      %s36 = scalar_select %p35, 0, %s34
      %s37 = sadd.s32 1, %s28
      %s38 = scalar_select %p35, %s37, %s28
      %p39 = scmp.ge.s32.totalorder %s38, 2
      %s40 = scalar_select %p39, 0, %s38
      %s41 = ssub.s32 %s28, %s40
      %s42 = ssub.s32 %s29, %s36
      %s43 = sor.u32 %s41, %s42
      %p44 = scmp.eq.s32.totalorder %s43, 0
      %s46 = sadd.s32 %s45, 1
      %s47 = scalar_select %p44, %s45, %s46
      %p50 = pneg %p44
      %p51 = scmp.eq.s32.totalorder %s21, 5
      %p52 = por %p50, %p51
      %p53 = scmp.ne.s32.totalorder %s45, %s48
      %p54 = scmp.eq.s32.totalorder %s21, 0
      %p55 = por %p53, %p54
      %p56 = scmp.ne.s32.totalorder %s45, %s48
      %p57 = scmp.eq.s32.totalorder %s26, 5
      %p58 = por %p56, %p57
      %p59 = scmp.ne.s32.totalorder %s48, %s49
      %p60 = scmp.eq.s32.totalorder %s26, 0
      %p61 = por %p59, %p60
      %p62 = scmp.ne.s32.totalorder %s48, %s49
      %p63 = scmp.eq.s32.totalorder %s27, 5
      %p64 = por %p62, %p63
      %p66 = scmp.ne.s32.totalorder %s49, %s65
      %p67 = scmp.eq.s32.totalorder %s27, 0
      %p68 = por %p66, %p67
      %s69 = ssub.s32 %s29, 1
      %p70 = scmp.gt.s32.totalorder %s69, 0
      %s71 = scalar_select %p70, %s69, 0
      %s72 = ssub.s32 %s36, 1
      %p73 = scmp.gt.s32.totalorder %s72, 0
      %s74 = scalar_select %p73, %s72, 0
      %s75 = ssub.s32 %s28, %s40
      %s76 = ssub.s32 %s71, %s74
      %s77 = sor.u32 %s75, %s76
      %p78 = scmp.eq.s32.totalorder %s77, 0
      %s80 = sadd.s32 %s79, 1
      %s81 = scalar_select %p78, %s79, %s80
      %p84 = pneg %p78
      %p85 = scmp.eq.s32.totalorder %s21, 5
      %p86 = por %p84, %p85
      %p87 = scmp.ne.s32.totalorder %s79, %s82
      %p88 = scmp.eq.s32.totalorder %s21, 0
      %p89 = por %p87, %p88
      %p90 = scmp.ne.s32.totalorder %s79, %s82
      %p91 = scmp.eq.s32.totalorder %s26, 5
      %p92 = por %p90, %p91
      %p93 = scmp.ne.s32.totalorder %s82, %s83
      %p94 = scmp.eq.s32.totalorder %s26, 0
      %p95 = por %p93, %p94
      %p96 = scmp.ne.s32.totalorder %s82, %s83
      %p97 = scmp.eq.s32.totalorder %s27, 5
      %p98 = por %p96, %p97
      %p100 = scmp.ne.s32.totalorder %s83, %s99
      %p101 = scmp.eq.s32.totalorder %s27, 0
      %p102 = por %p100, %p101
      %s103 = sadd.s32 %s29, 1
      %p104 = scmp.lt.s32.totalorder %s103, 2
      %s105 = scalar_select %p104, %s103, 2
      %s106 = sadd.s32 %s36, 1
      %p107 = scmp.lt.s32.totalorder %s106, 2
      %s108 = scalar_select %p107, %s106, 2
      %s109 = ssub.s32 %s28, %s40
      %s110 = ssub.s32 %s105, %s108
      %s111 = sor.u32 %s109, %s110
      %p112 = scmp.eq.s32.totalorder %s111, 0
      %s114 = sadd.s32 %s113, 1
      %s115 = scalar_select %p112, %s113, %s114
      %p118 = pneg %p112
      %p119 = scmp.eq.s32.totalorder %s21, 5
      %p120 = por %p118, %p119
      %p121 = scmp.ne.s32.totalorder %s113, %s116
      %p122 = scmp.eq.s32.totalorder %s21, 0
      %p123 = por %p121, %p122
      %p124 = scmp.ne.s32.totalorder %s113, %s116
      %p125 = scmp.eq.s32.totalorder %s26, 5
      %p126 = por %p124, %p125
      %p127 = scmp.ne.s32.totalorder %s116, %s117
      %p128 = scmp.eq.s32.totalorder %s26, 0
      %p129 = por %p127, %p128
      %p130 = scmp.ne.s32.totalorder %s116, %s117
      %p131 = scmp.eq.s32.totalorder %s27, 5
      %p132 = por %p130, %p131
      %p134 = scmp.ne.s32.totalorder %s117, %s133
      %p135 = scmp.eq.s32.totalorder %s27, 0
      %p136 = por %p134, %p135
      %s138 = sadd.s32 %s137, 1
      %p141 = scmp.eq.s32.totalorder %s21, 5
      %p142 = scmp.ne.s32.totalorder %s137, %s139
      %p143 = scmp.eq.s32.totalorder %s21, 0
      %p144 = por %p142, %p143
      %p145 = scmp.ne.s32.totalorder %s137, %s139
      %p146 = scmp.eq.s32.totalorder %s26, 5
      %p147 = por %p145, %p146
      %p148 = scmp.ne.s32.totalorder %s139, %s140
      %p149 = scmp.eq.s32.totalorder %s26, 0
      %p150 = por %p148, %p149
      %p151 = scmp.ne.s32.totalorder %s139, %s140
      %p152 = scmp.eq.s32.totalorder %s27, 5
      %p153 = por %p151, %p152
      %p155 = scmp.ne.s32.totalorder %s140, %s154
      %p156 = scmp.eq.s32.totalorder %s27, 0
      %p157 = por %p155, %p156
      %s159 = sadd.s32 %s158, 1
      %p162 = scmp.eq.s32.totalorder %s21, 5
      %p163 = scmp.ne.s32.totalorder %s158, %s160
      %p164 = scmp.eq.s32.totalorder %s21, 0
      %p165 = por %p163, %p164
      %p166 = scmp.ne.s32.totalorder %s158, %s160
      %p167 = scmp.eq.s32.totalorder %s26, 5
      %p168 = por %p166, %p167
      %p169 = scmp.ne.s32.totalorder %s160, %s161
      %p170 = scmp.eq.s32.totalorder %s26, 0
      %p171 = por %p169, %p170
      %p172 = scmp.ne.s32.totalorder %s160, %s161
      %p173 = scmp.eq.s32.totalorder %s27, 5
      %p174 = por %p172, %p173
      %p176 = scmp.ne.s32.totalorder %s161, %s175
      %p177 = scmp.eq.s32.totalorder %s27, 0
      %p178 = por %p176, %p177
      %s179 = ssub.s32 %s28, %s40
      %s180 = ssub.s32 %s29, %s36
      %s181 = sor.u32 %s179, %s180
      %p182 = scmp.eq.s32.totalorder %s181, 0
      %s184 = sadd.s32 %s183, 1
      %s185 = scalar_select %p182, %s183, %s184
      %p188 = pneg %p182
      %p189 = scmp.eq.s32.totalorder %s21, 5
      %p190 = por %p188, %p189
      %p191 = scmp.ne.s32.totalorder %s183, %s186
      %p192 = scmp.eq.s32.totalorder %s21, 0
      %p193 = por %p191, %p192
      %p194 = scmp.ne.s32.totalorder %s183, %s186
      %p195 = scmp.eq.s32.totalorder %s26, 5
      %p196 = por %p194, %p195
      %p197 = scmp.ne.s32.totalorder %s186, %s187
      %p198 = scmp.eq.s32.totalorder %s26, 0
      %p199 = por %p197, %p198
      %p200 = scmp.ne.s32.totalorder %s186, %s187
      %p201 = scmp.eq.s32.totalorder %s27, 5
      %p202 = por %p200, %p201
      %p204 = scmp.ne.s32.totalorder %s187, %s203
      %p205 = scmp.eq.s32.totalorder %s27, 0
      %p206 = por %p204, %p205
      %s207 = ssub.s32 %s28, %s40
      %s208 = ssub.s32 %s29, %s36
      %s209 = sor.u32 %s207, %s208
      %p210 = scmp.eq.s32.totalorder %s209, 0
      %s212 = sadd.s32 %s211, 1
      %s213 = scalar_select %p210, %s211, %s212
      %p216 = pneg %p210
      %p217 = scmp.eq.s32.totalorder %s21, 5
      %p218 = por %p216, %p217
      %p219 = scmp.ne.s32.totalorder %s211, %s214
      %p220 = scmp.eq.s32.totalorder %s21, 0
      %p221 = por %p219, %p220
      %p222 = scmp.ne.s32.totalorder %s211, %s214
      %p223 = scmp.eq.s32.totalorder %s26, 5
      %p224 = por %p222, %p223
      %p225 = scmp.ne.s32.totalorder %s214, %s215
      %p226 = scmp.eq.s32.totalorder %s26, 0
      %p227 = por %p225, %p226
      %p228 = scmp.ne.s32.totalorder %s214, %s215
      %p229 = scmp.eq.s32.totalorder %s27, 5
      %p230 = por %p228, %p229
      %p232 = scmp.ne.s32.totalorder %s215, %s231
      %p233 = scmp.eq.s32.totalorder %s27, 0
      %p234 = por %p232, %p233
      %p235 = scmp.le.s32.totalorder 1, %s21
      %p236 = scmp.lt.s32.totalorder %s21, 7
      %p237 = pnand %p235, %p236
      %p238 = pneg %p237
      // Predicated region
      $region9: #{tpu_custom_call.1} parent=5 // pred_check
        _
      $region10: #{tpu_custom_call.1} parent=5 // pred_check_branch
        %240 = sbr.rel (%p237) target = $region12
      $region11: #{tpu_custom_call.1} parent=5 // pred_region
        %s241 = ssub.s32 %s21, 1
        // Predicated region
        $region13: #{tpu_custom_call.1} parent=11 // pred_check
          %p242 = pneg %p150
        $region14: #{tpu_custom_call.1} parent=11 // pred_check_branch
          %244 = sbr.rel (%p242) target = $region16
        $region15: #{tpu_custom_call.1} parent=11 // pred_region
          _
        $region16: #{tpu_custom_call.1} parent=11 // pred_fallthru
          _
        // Predicated region
        $region17: #{tpu_custom_call.1} parent=11 // pred_check
          %p245 = pneg %p171
        $region18: #{tpu_custom_call.1} parent=11 // pred_check_branch
          %247 = sbr.rel (%p245) target = $region20
        $region19: #{tpu_custom_call.1} parent=11 // pred_region
          _
        $region20: #{tpu_custom_call.1} parent=11 // pred_fallthru
          _
      $region12: #{tpu_custom_call.1} parent=5 // pred_fallthru
        _
      %p248 = scmp.lt.s32.totalorder %s21, 6
      // Predicated region
      $region21: #{tpu_custom_call.1} parent=5 // pred_check
        %p249 = pneg %p248
      $region22: #{tpu_custom_call.1} parent=5 // pred_check_branch
        %251 = sbr.rel (%p249) target = $region24
      $region23: #{tpu_custom_call.1} parent=5 // pred_region
        // Predicated region
        $region25: #{tpu_custom_call.1} parent=23 // pred_check
          %p252 = pneg %p55
        $region26: #{tpu_custom_call.1} parent=23 // pred_check_branch
          %254 = sbr.rel (%p252) target = $region28
        $region27: #{tpu_custom_call.1} parent=23 // pred_region
          %s255 = sand.u32 %s45, 1
          %s256 = sand.u32 %s45, 1
          %s257 = smul.addr %s256, 16
          %s258 = scalar_lea.vmem [#allocation2], %s257
          %s259 = smul.addr %s28, 6
          %s260 = sadd.s32 %s29, %s259
          %s261 = smul.addr %s260, 8
          %s262 = scalar_lea.vmem %s0, %s261
          // Predicated region
          $region29: #{tpu_custom_call.1} parent=27 // pred_check
            _
          $region30: #{tpu_custom_call.1} parent=27 // pred_check_branch
            %264 = sbr.rel (0) target = $region32
          $region31: #{tpu_custom_call.1} parent=27 // pred_region
            // Predicated region
            $region33: #{tpu_custom_call.1} parent=31 // pred_check
              _
            $region34: #{tpu_custom_call.1} parent=31 // pred_check_branch
              %266 = sbr.rel (0) target = $region36
            $region35: #{tpu_custom_call.1} parent=31 // pred_region
              // Predicated region
              $region48: #{tpu_custom_call.1} parent=35 // pred_check
                _
              $region49: #{tpu_custom_call.1} parent=35 // pred_check_branch
                %284 = sbr.rel (0) target = $region51
              $region50: #{tpu_custom_call.1} parent=35 // pred_region
                loop: start=0, step=1, limit=1
                $region52: #{tpu_custom_call.1} parent=50 // loop_pre_header
                  _
                $region53: #{tpu_custom_call.1} parent=50 // loop_header
                  %s286 = sphi 0, %s290
                  %p287 = scmp.ge.s32.totalorder %s286, 1
                  %s291 = sphi %s262, %s262
                  %s292 = sphi %s258, %s258
                $region54: #{tpu_custom_call.1} parent=50 // loop_header_branch
                  %289 = sbr.rel (%p287) target = $region58
                $region55: #{tpu_custom_call.1} parent=50 // loop_body
                  %v293 = vld [vmem:[%s291] sm:$0xff]
                  %294 = vst [vmem:[%s292] sm:$0xff] %v293
                  %v295 = vld [vmem:[%s291 + $0x18] sm:$0xff]
                  %296 = vst [vmem:[%s292 + $0x8] sm:$0xff] %v295
                $region56: #{tpu_custom_call.1} parent=50 // loop_footer
                  %s290 = sadd.s32 1, %s286
                $region57: #{tpu_custom_call.1} parent=50 // loop_footer_branch
                  %285 = sbr.rel target = $region53
                $region58: #{tpu_custom_call.1} parent=50 // loop_exit
                  _
              $region51: #{tpu_custom_call.1} parent=35 // pred_fallthru
                _
              // Predicated region
              $region59: #{tpu_custom_call.1} parent=35 // pred_check
                _
              $region60: #{tpu_custom_call.1} parent=35 // pred_check_branch
                %298 = sbr.rel target = $region62
              $region61: #{tpu_custom_call.1} parent=35 // pred_region
                _
              $region62: #{tpu_custom_call.1} parent=35 // pred_fallthru
                _
            $region36: #{tpu_custom_call.1} parent=31 // pred_fallthru
              _
            // Predicated region
            $region37: #{tpu_custom_call.1} parent=31 // pred_check
              _
            $region38: #{tpu_custom_call.1} parent=31 // pred_check_branch
              %268 = sbr.rel target = $region40
            $region39: #{tpu_custom_call.1} parent=31 // pred_region
              %s270 = ssub.s32 256, 1
              loop: start=0, step=1, limit=1
              $region41: #{tpu_custom_call.1} parent=39 // loop_pre_header
                _
              $region42: #{tpu_custom_call.1} parent=39 // loop_header
                %s272 = sphi 0, %s276
                %p273 = scmp.ge.s32.totalorder %s272, 1
                %s277 = sphi %s262, %s262
                %s278 = sphi %s258, %s258
              $region43: #{tpu_custom_call.1} parent=39 // loop_header_branch
                %275 = sbr.rel (%p273) target = $region47
              $region44: #{tpu_custom_call.1} parent=39 // loop_body
                %v279 = vld [vmem:[%s277] sm:%s270]
                %280 = vst [vmem:[%s278] sm:%s270] %v279
                %v281 = vld [vmem:[%s277 + $0x18] sm:%s270]
                %282 = vst [vmem:[%s278 + $0x8] sm:%s270] %v281
              $region45: #{tpu_custom_call.1} parent=39 // loop_footer
                %s276 = sadd.s32 1, %s272
              $region46: #{tpu_custom_call.1} parent=39 // loop_footer_branch
                %271 = sbr.rel target = $region42
              $region47: #{tpu_custom_call.1} parent=39 // loop_exit
                _
            $region40: #{tpu_custom_call.1} parent=31 // pred_fallthru
              _
          $region32: #{tpu_custom_call.1} parent=27 // pred_fallthru
            _
          %299 = vnop
        $region28: #{tpu_custom_call.1} parent=23 // pred_fallthru
          _
        // Predicated region
        $region63: #{tpu_custom_call.1} parent=23 // pred_check
          %p300 = pneg %p89
        $region64: #{tpu_custom_call.1} parent=23 // pred_check_branch
          %302 = sbr.rel (%p300) target = $region66
        $region65: #{tpu_custom_call.1} parent=23 // pred_region
          %s303 = sand.u32 %s79, 1
          %s304 = scalar_lea.sflag [#allocation4], %s303
          %s305 = sand.u32 %s79, 1
          %s306 = smul.addr %s305, 16
          %s307 = scalar_lea.vmem [#allocation3], %s306
          %s308 = ssub.s32 %s29, 1
          %p309 = scmp.gt.s32.totalorder %s308, 0
          %s310 = scalar_select %p309, %s308, 0
          %312 = vsyncadd %s304, 0
          %s313 = smul.addr %s28, 6
          %s314 = sadd.s32 %s310, %s313
          %s315 = smul.addr %s314, 8
          %s316 = scalar_lea.hbm %s1, %s315
          %s317 = sshll.u32 %s316, 4
          %s318 = int_to_ptr.hbm [resolvable:$true] %s317
          %s319 = sshll.u32 %s307, 4
          %s320 = int_to_ptr.vmem [resolvable:$true] %s319
          %325 = dma.hbm_to_vmem [thread:$0]  %s318, 256, %s320, %s304, 384, 128, 8
        $region66: #{tpu_custom_call.1} parent=23 // pred_fallthru
          _
        // Predicated region
        $region67: #{tpu_custom_call.1} parent=23 // pred_check
          %p326 = pneg %p123
        $region68: #{tpu_custom_call.1} parent=23 // pred_check_branch
          %328 = sbr.rel (%p326) target = $region70
        $region69: #{tpu_custom_call.1} parent=23 // pred_region
          %s329 = sand.u32 %s113, 1
          %s330 = scalar_lea.sflag [#allocation7], %s329
          %s331 = sand.u32 %s113, 1
          %s332 = smul.addr %s331, 16
          %s333 = scalar_lea.vmem [#allocation6], %s332
          %s334 = sadd.s32 %s29, 1
          %p335 = scmp.lt.s32.totalorder %s334, 2
          %s336 = scalar_select %p335, %s334, 2
          %338 = vsyncadd %s330, 0
          %s339 = smul.addr %s28, 6
          %s340 = sadd.s32 %s336, %s339
          %s341 = smul.addr %s340, 8
          %s342 = scalar_lea.hbm %s2, %s341
          %s343 = sshll.u32 %s342, 4
          %s344 = int_to_ptr.hbm [resolvable:$true] %s343
          %s345 = sshll.u32 %s333, 4
          %s346 = int_to_ptr.vmem [resolvable:$true] %s345
          %351 = dma.hbm_to_vmem [thread:$0]  %s344, 256, %s346, %s330, 384, 128, 8
        $region70: #{tpu_custom_call.1} parent=23 // pred_fallthru
          _
        // Predicated region
        $region71: #{tpu_custom_call.1} parent=23 // pred_check
          %p352 = pneg %p193
        $region72: #{tpu_custom_call.1} parent=23 // pred_check_branch
          %354 = sbr.rel (%p352) target = $region74
        $region73: #{tpu_custom_call.1} parent=23 // pred_region
          %s355 = sand.u32 %s183, 1
          %s356 = sand.u32 %s183, 1
          %s357 = smul.addr %s356, 24
          %s358 = scalar_lea.vmem [#allocation8], %s357
          %s359 = smul.addr %s28, 9
          %s360 = sadd.s32 %s29, %s359
          %s361 = smul.addr %s360, 8
          %s362 = scalar_lea.vmem %s5, %s361
          // Predicated region
          $region75: #{tpu_custom_call.1} parent=73 // pred_check
            _
          $region76: #{tpu_custom_call.1} parent=73 // pred_check_branch
            %364 = sbr.rel (0) target = $region78
          $region77: #{tpu_custom_call.1} parent=73 // pred_region
            // Predicated region
            $region79: #{tpu_custom_call.1} parent=77 // pred_check
              _
            $region80: #{tpu_custom_call.1} parent=77 // pred_check_branch
              %366 = sbr.rel (0) target = $region82
            $region81: #{tpu_custom_call.1} parent=77 // pred_region
              // Predicated region
              $region94: #{tpu_custom_call.1} parent=81 // pred_check
                _
              $region95: #{tpu_custom_call.1} parent=81 // pred_check_branch
                %386 = sbr.rel (0) target = $region97
              $region96: #{tpu_custom_call.1} parent=81 // pred_region
                loop: start=0, step=1, limit=1
                $region98: #{tpu_custom_call.1} parent=96 // loop_pre_header
                  _
                $region99: #{tpu_custom_call.1} parent=96 // loop_header
                  %s388 = sphi 0, %s392
                  %p389 = scmp.ge.s32.totalorder %s388, 1
                  %s393 = sphi %s362, %s362
                  %s394 = sphi %s358, %s358
                $region100: #{tpu_custom_call.1} parent=96 // loop_header_branch
                  %391 = sbr.rel (%p389) target = $region104
                $region101: #{tpu_custom_call.1} parent=96 // loop_body
                  %v395 = vld [vmem:[%s393] sm:$0xff]
                  %396 = vst [vmem:[%s394] sm:$0xff] %v395
                  %v397 = vld [vmem:[%s393 + $0x18] sm:$0xff]
                  %398 = vst [vmem:[%s394 + $0x8] sm:$0xff] %v397
                  %v399 = vld [vmem:[%s393 + $0x30] sm:$0xff]
                  %400 = vst [vmem:[%s394 + $0x10] sm:$0xff] %v399
                $region102: #{tpu_custom_call.1} parent=96 // loop_footer
                  %s392 = sadd.s32 1, %s388
                $region103: #{tpu_custom_call.1} parent=96 // loop_footer_branch
                  %387 = sbr.rel target = $region99
                $region104: #{tpu_custom_call.1} parent=96 // loop_exit
                  _
              $region97: #{tpu_custom_call.1} parent=81 // pred_fallthru
                _
              // Predicated region
              $region105: #{tpu_custom_call.1} parent=81 // pred_check
                _
              $region106: #{tpu_custom_call.1} parent=81 // pred_check_branch
                %402 = sbr.rel target = $region108
              $region107: #{tpu_custom_call.1} parent=81 // pred_region
                _
              $region108: #{tpu_custom_call.1} parent=81 // pred_fallthru
                _
            $region82: #{tpu_custom_call.1} parent=77 // pred_fallthru
              _
            // Predicated region
            $region83: #{tpu_custom_call.1} parent=77 // pred_check
              _
            $region84: #{tpu_custom_call.1} parent=77 // pred_check_branch
              %368 = sbr.rel target = $region86
            $region85: #{tpu_custom_call.1} parent=77 // pred_region
              %s370 = ssub.s32 256, 1
              loop: start=0, step=1, limit=1
              $region87: #{tpu_custom_call.1} parent=85 // loop_pre_header
                _
              $region88: #{tpu_custom_call.1} parent=85 // loop_header
                %s372 = sphi 0, %s376
                %p373 = scmp.ge.s32.totalorder %s372, 1
                %s377 = sphi %s362, %s362
                %s378 = sphi %s358, %s358
              $region89: #{tpu_custom_call.1} parent=85 // loop_header_branch
                %375 = sbr.rel (%p373) target = $region93
              $region90: #{tpu_custom_call.1} parent=85 // loop_body
                %v379 = vld [vmem:[%s377] sm:%s370]
                %380 = vst [vmem:[%s378] sm:%s370] %v379
                %v381 = vld [vmem:[%s377 + $0x18] sm:%s370]
                %382 = vst [vmem:[%s378 + $0x8] sm:%s370] %v381
                %v383 = vld [vmem:[%s377 + $0x30] sm:%s370]
                %384 = vst [vmem:[%s378 + $0x10] sm:%s370] %v383
              $region91: #{tpu_custom_call.1} parent=85 // loop_footer
                %s376 = sadd.s32 1, %s372
              $region92: #{tpu_custom_call.1} parent=85 // loop_footer_branch
                %371 = sbr.rel target = $region88
              $region93: #{tpu_custom_call.1} parent=85 // loop_exit
                _
            $region86: #{tpu_custom_call.1} parent=77 // pred_fallthru
              _
          $region78: #{tpu_custom_call.1} parent=73 // pred_fallthru
            _
          %403 = vnop
        $region74: #{tpu_custom_call.1} parent=23 // pred_fallthru
          _
      $region24: #{tpu_custom_call.1} parent=5 // pred_fallthru
        _
      %p404 = scmp.le.s32.totalorder 1, %s21
      %p405 = scmp.lt.s32.totalorder %s21, 7
      %p406 = pnand %p404, %p405
      %p407 = pneg %p406
      // Predicated region
      $region109: #{tpu_custom_call.1} parent=5 // pred_check
        _
      $region110: #{tpu_custom_call.1} parent=5 // pred_check_branch
        %409 = sbr.rel (%p406) target = $region112
      $region111: #{tpu_custom_call.1} parent=5 // pred_region
        %s410 = ssub.s32 %s21, 1
        %s411 = sand.u32 %s48, 1
        %s412 = sand.u32 %s48, 1
        %s413 = smul.addr %s412, 16
        %s414 = scalar_lea.vmem [#allocation2], %s413
        // Predicated region
        $region113: #{tpu_custom_call.1} parent=111 // pred_check
          %p415 = pneg %p61
        $region114: #{tpu_custom_call.1} parent=111 // pred_check_branch
          %417 = sbr.rel (%p415) target = $region116
        $region115: #{tpu_custom_call.1} parent=111 // pred_region
          _
        $region116: #{tpu_custom_call.1} parent=111 // pred_fallthru
          _
        %s418 = sand.u32 %s82, 1
        %s419 = scalar_lea.sflag [#allocation4], %s418
        %s420 = sand.u32 %s82, 1
        %s421 = smul.addr %s420, 16
        %s422 = scalar_lea.vmem [#allocation3], %s421
        // Predicated region
        $region117: #{tpu_custom_call.1} parent=111 // pred_check
          %p423 = pneg %p95
        $region118: #{tpu_custom_call.1} parent=111 // pred_check_branch
          %425 = sbr.rel (%p423) target = $region120
        $region119: #{tpu_custom_call.1} parent=111 // pred_region
          %427 = dma.done %s419, 256
        $region120: #{tpu_custom_call.1} parent=111 // pred_fallthru
          _
        %s428 = sand.u32 %s116, 1
        %s429 = scalar_lea.sflag [#allocation7], %s428
        %s430 = sand.u32 %s116, 1
        %s431 = smul.addr %s430, 16
        %s432 = scalar_lea.vmem [#allocation6], %s431
        // Predicated region
        $region121: #{tpu_custom_call.1} parent=111 // pred_check
          %p433 = pneg %p129
        $region122: #{tpu_custom_call.1} parent=111 // pred_check_branch
          %435 = sbr.rel (%p433) target = $region124
        $region123: #{tpu_custom_call.1} parent=111 // pred_region
          %437 = dma.done %s429, 256
        $region124: #{tpu_custom_call.1} parent=111 // pred_fallthru
          _
        %s438 = sand.u32 %s186, 1
        %s439 = sand.u32 %s186, 1
        %s440 = smul.addr %s439, 24
        %s441 = scalar_lea.vmem [#allocation8], %s440
        // Predicated region
        $region125: #{tpu_custom_call.1} parent=111 // pred_check
          %p442 = pneg %p199
        $region126: #{tpu_custom_call.1} parent=111 // pred_check_branch
          %444 = sbr.rel (%p442) target = $region128
        $region127: #{tpu_custom_call.1} parent=111 // pred_region
          _
        $region128: #{tpu_custom_call.1} parent=111 // pred_fallthru
          _
        %s445 = sand.u32 %s48, 1
        %s446 = sand.u32 %s48, 1
        %s447 = smul.addr %s446, 16
        %s448 = scalar_lea.vmem [#allocation2], %s447
        %p449 = pneg %p61
        %p450 = pneg %p58
        %s451 = sand.u32 %s82, 1
        %s452 = scalar_lea.sflag [#allocation4], %s451
        %s453 = sand.u32 %s82, 1
        %s454 = smul.addr %s453, 16
        %s455 = scalar_lea.vmem [#allocation3], %s454
        %p456 = pneg %p95
        %p457 = pneg %p92
        %s458 = sand.u32 %s116, 1
        %s459 = scalar_lea.sflag [#allocation7], %s458
        %s460 = sand.u32 %s116, 1
        %s461 = smul.addr %s460, 16
        %s462 = scalar_lea.vmem [#allocation6], %s461
        %p463 = pneg %p129
        %p464 = pneg %p126
        %p465 = pneg %p150
        %p466 = pneg %p147
        %p467 = pneg %p171
        %p468 = pneg %p168
        %s469 = sand.u32 %s186, 1
        %s470 = sand.u32 %s186, 1
        %s471 = smul.addr %s470, 24
        %s472 = scalar_lea.vmem [#allocation8], %s471
        %p473 = pneg %p199
        %p474 = pneg %p196
        %p475 = pneg %p227
        %p476 = pneg %p224
        %s477 = sand.u32 %s214, 1
        %s478 = scalar_lea.sflag [#allocation5], %s477
        %s479 = sand.u32 %s214, 1
        %s480 = smul.addr %s479, 24
        %s481 = scalar_lea.vmem [#allocation9], %s480
        %s482 = ssub.s32 %s31, 1
        %p483 = scmp.gt.s32.totalorder %s482, 0
        %s484 = scalar_select %p483, %s482, 0
        %s485 = sadd.s32 %s31, 1
        %p486 = scmp.lt.s32.totalorder %s485, 2
        %s487 = scalar_select %p486, %s485, 2
        %v488 = vld [vmem:[%s414] sm:$0xff]
        %v489 = vld [vmem:[%s414 + $0x8] sm:$0xff]
        %v490 = vld [vmem:[%s422] sm:$0xff]
        %v491 = vld [vmem:[%s422 + $0x8] sm:$0xff]
        %v492 = vld [vmem:[%s432] sm:$0xff]
        %v493 = vld [vmem:[%s432 + $0x8] sm:$0xff]
        %496 = vrot.lane.b32.xlu0 %v490, 9
        %v497 = vpop.permute.xlu0 %496
        %498 = vrot.lane.b32.xlu0 %v491, 9
        %v499 = vpop.permute.xlu0 %498
        %504 = vrot.lane.b32.xlu0 %v488, 9
        %v505 = vpop.permute.xlu0 %504
        %506 = vrot.lane.b32.xlu0 %v489, 9
        %v507 = vpop.permute.xlu0 %506
        %512 = vrot.lane.b32.xlu0 %v492, 9
        %v513 = vpop.permute.xlu0 %512
        %514 = vrot.lane.b32.xlu0 %v493, 9
        %v515 = vpop.permute.xlu0 %514
        %vm518 = vcmask 72704
        %v519 = vsel %vm518, %v497, %v505
        %v520 = vsel %vm518, %v499, %v507
        %v521 = vsel %vm518, %v505, %v513
        %v522 = vsel %vm518, %v507, %v515
        %s523 = smul.u32 %s31, 128
        %v524 = vlaneseq
        %v525 = vand.u32 %v524, 127
        %v526 = vadd.s32 %v525, 128
        %s527 = ssub.s32 %s523, 9
        %v528 = vstv %s527
        %v529 = vadd.s32 %v525, %v528
        %v530 = vadd.s32 %v526, %v528
        %vm531 = vcmp.ge.s32.totalorder %v529, 0
        %vm532 = vcmp.ge.s32.totalorder %v530, 0
        %vm533 = vcmp.lt.s32.totalorder %v529, 333
        %vm534 = vcmp.lt.s32.totalorder %v530, 333
        %vm535 = vmand %vm531, %vm533
        %vm536 = vmand %vm532, %vm534
        %v537 = vsel %vm535, 1, 0
        %v538 = vsel %vm536, 1, 0
        %vm539 = vcmp.eq.s32.totalorder %v537, 1
        %vm540 = vcmp.eq.s32.totalorder %v538, 1
        %v541 = vsel %vm539, %v519, 0.0
        %v542 = vsel %vm540, %v521, 0.0
        %v543 = vsel %vm539, %v520, 0.0
        %v544 = vsel %vm540, %v522, 0.0
        %vm545 = vcmp.ge.f32.partialorder %v541, 0.0
        %vm546 = vcmp.ge.f32.partialorder %v542, 0.0
        %vm547 = vcmp.ge.f32.partialorder %v543, 0.0
        %vm548 = vcmp.ge.f32.partialorder %v544, 0.0
        %v549 = vmul.f32 %v541, 0.1
        %v550 = vmul.f32 %v542, 0.1
        %v551 = vmul.f32 %v543, 0.1
        %v552 = vmul.f32 %v544, 0.1
        %v553 = vsel %vm545, %v541, %v549
        %v554 = vsel %vm546, %v542, %v550
        %v555 = vsel %vm547, %v543, %v551
        %v556 = vsel %vm548, %v544, %v552
        %v557 = vld [vmem:[%s3] sm:$0xff]
        %v558 = vld [vmem:[%s3 + $0x8] sm:$0xff]
        %v559 = vld [vmem:[%s3 + $0x10] sm:$0xff]
        %s560 = scalar_lea.vmem %s3, 24
        %v561 = vld [vmem:[%s560] sm:$0xff]
        %v562 = vld [vmem:[%s560 + $0x8] sm:$0xff]
        %v563 = vld [vmem:[%s560 + $0x10] sm:$0xff]
        %568 = vrot.lane.b32.xlu0 %v553, 125
        %v569 = vpop.permute.xlu0 %568
        %570 = vrot.lane.b32.xlu0 %v554, 125
        %v571 = vpop.permute.xlu0 %570
        %572 = vrot.lane.b32.xlu0 %v555, 125
        %v573 = vpop.permute.xlu0 %572
        %574 = vrot.lane.b32.xlu0 %v556, 125
        %v575 = vpop.permute.xlu0 %574
        %vm576 = vcmask 1022976
        %v577 = vsel %vm576, %v569, %v571
        %v578 = vsel %vm576, %v573, %v575
        %vm581 = vcmask 130048
        %v583 = vsel %vm581, %v561, 0
        %v586 = vsel %vm581, %v562, 0
        %v589 = vsel %vm581, %v563, 0
        %591 = vmatpush.msra.mxu0 0.0
        %592 = vmatpush.msra.mxu0 0.0
        %593 = vmatpush.msra.mxu0 0.0
        %594 = vmatpush.msra.mxu0 0.0
        %595 = vmatpush.msra.mxu0 0.0
        %596 = vmatpush.msra.mxu0 0.0
        %597 = vmatpush.msra.mxu0 0.0
        %598 = vmatpush.msra.mxu0 0.0
        %599 = vmatpush.msra.mxu0 0.0
        %600 = vmatpush.msra.mxu0 0.0
        %601 = vmatpush.msra.mxu0 0.0
        %602 = vmatpush.msra.mxu0 0.0
        %603 = vmatpush.msra.mxu0 0.0
        %604 = vmatpush.msra.mxu0 0.0
        %605 = vmatpush.msra.mxu0 %v578
        %606 = vmatpush.msra.mxu0 %v577
        %607 = vmatmul.f32.gmra.mxu0 %v583
        %v608 = vpop.f32.mrf.mxu0
        %v609 = vadd.f32 0.0, %v608
        %610 = vmatmul.f32.gmra.mxu0 %v586
        %v611 = vpop.f32.mrf.mxu0
        %v612 = vadd.f32 0.0, %v611
        %613 = vmatmul.f32.gmra.mxu0 %v589
        %v614 = vpop.f32.mrf.mxu0
        %v615 = vadd.f32 0.0, %v614
        %616 = vdwg.mxu0
        %v618 = vsel %vm581, %v557, 0
        %v621 = vsel %vm581, %v558, 0
        %v624 = vsel %vm581, %v559, 0
        %626 = vmatpush.msra.mxu0 0.0
        %627 = vmatpush.msra.mxu0 0.0
        %628 = vmatpush.msra.mxu0 0.0
        %629 = vmatpush.msra.mxu0 0.0
        %630 = vmatpush.msra.mxu0 0.0
        %631 = vmatpush.msra.mxu0 0.0
        %632 = vmatpush.msra.mxu0 0.0
        %633 = vmatpush.msra.mxu0 0.0
        %634 = vmatpush.msra.mxu0 0.0
        %635 = vmatpush.msra.mxu0 0.0
        %636 = vmatpush.msra.mxu0 0.0
        %637 = vmatpush.msra.mxu0 0.0
        %638 = vmatpush.msra.mxu0 0.0
        %639 = vmatpush.msra.mxu0 0.0
        %640 = vmatpush.msra.mxu0 %v555
        %641 = vmatpush.msra.mxu0 %v553
        %642 = vmatmul.f32.gmra.mxu0 %v618
        %v643 = vpop.f32.mrf.mxu0
        %v644 = vadd.f32 %v609, %v643
        %645 = vmatmul.f32.gmra.mxu0 %v621
        %v646 = vpop.f32.mrf.mxu0
        %v647 = vadd.f32 %v612, %v646
        %648 = vmatmul.f32.gmra.mxu0 %v624
        %v649 = vpop.f32.mrf.mxu0
        %v650 = vadd.f32 %v615, %v649
        %651 = vdwg.mxu0
        %s652 = scalar_lea.vmem %s3, 48
        %v653 = vld [vmem:[%s652] sm:$0xff]
        %v654 = vld [vmem:[%s652 + $0x8] sm:$0xff]
        %v655 = vld [vmem:[%s652 + $0x10] sm:$0xff]
        %656 = vrot.lane.b32.xlu0 %v553, 122
        %v657 = vpop.permute.xlu0 %656
        %658 = vrot.lane.b32.xlu0 %v554, 122
        %v659 = vpop.permute.xlu0 %658
        %660 = vrot.lane.b32.xlu0 %v555, 122
        %v661 = vpop.permute.xlu0 %660
        %662 = vrot.lane.b32.xlu0 %v556, 122
        %v663 = vpop.permute.xlu0 %662
        %vm664 = vcmask 998400
        %v665 = vsel %vm664, %v657, %v659
        %v666 = vsel %vm664, %v661, %v663
        %v670 = vsel %vm581, %v653, 0
        %v673 = vsel %vm581, %v654, 0
        %v676 = vsel %vm581, %v655, 0
        %678 = vmatpush.msra.mxu0 0.0
        %679 = vmatpush.msra.mxu0 0.0
        %680 = vmatpush.msra.mxu0 0.0
        %681 = vmatpush.msra.mxu0 0.0
        %682 = vmatpush.msra.mxu0 0.0
        %683 = vmatpush.msra.mxu0 0.0
        %684 = vmatpush.msra.mxu0 0.0
        %685 = vmatpush.msra.mxu0 0.0
        %686 = vmatpush.msra.mxu0 0.0
        %687 = vmatpush.msra.mxu0 0.0
        %688 = vmatpush.msra.mxu0 0.0
        %689 = vmatpush.msra.mxu0 0.0
        %690 = vmatpush.msra.mxu0 0.0
        %691 = vmatpush.msra.mxu0 0.0
        %692 = vmatpush.msra.mxu0 %v666
        %693 = vmatpush.msra.mxu0 %v665
        %694 = vmatmul.f32.gmra.mxu0 %v670
        %v695 = vpop.f32.mrf.mxu0
        %v696 = vadd.f32 0.0, %v695
        %697 = vmatmul.f32.gmra.mxu0 %v673
        %v698 = vpop.f32.mrf.mxu0
        %v699 = vadd.f32 0.0, %v698
        %700 = vmatmul.f32.gmra.mxu0 %v676
        %v701 = vpop.f32.mrf.mxu0
        %v702 = vadd.f32 0.0, %v701
        %703 = vdwg.mxu0
        %v704 = vadd.f32 %v644, %v696
        %v705 = vadd.f32 %v647, %v699
        %v706 = vadd.f32 %v650, %v702
        %s707 = scalar_lea.vmem %s3, 72
        %v708 = vld [vmem:[%s707] sm:$0xff]
        %v709 = vld [vmem:[%s707 + $0x8] sm:$0xff]
        %v710 = vld [vmem:[%s707 + $0x10] sm:$0xff]
        %711 = vrot.lane.b32.xlu0 %v553, 119
        %v712 = vpop.permute.xlu0 %711
        %713 = vrot.lane.b32.xlu0 %v554, 119
        %v714 = vpop.permute.xlu0 %713
        %715 = vrot.lane.b32.xlu0 %v555, 119
        %v716 = vpop.permute.xlu0 %715
        %717 = vrot.lane.b32.xlu0 %v556, 119
        %v718 = vpop.permute.xlu0 %717
        %vm719 = vcmask 973824
        %v720 = vsel %vm719, %v712, %v714
        %v721 = vsel %vm719, %v716, %v718
        %v725 = vsel %vm581, %v708, 0
        %v728 = vsel %vm581, %v709, 0
        %v731 = vsel %vm581, %v710, 0
        %733 = vmatpush.msra.mxu0 0.0
        %734 = vmatpush.msra.mxu0 0.0
        %735 = vmatpush.msra.mxu0 0.0
        %736 = vmatpush.msra.mxu0 0.0
        %737 = vmatpush.msra.mxu0 0.0
        %738 = vmatpush.msra.mxu0 0.0
        %739 = vmatpush.msra.mxu0 0.0
        %740 = vmatpush.msra.mxu0 0.0
        %741 = vmatpush.msra.mxu0 0.0
        %742 = vmatpush.msra.mxu0 0.0
        %743 = vmatpush.msra.mxu0 0.0
        %744 = vmatpush.msra.mxu0 0.0
        %745 = vmatpush.msra.mxu0 0.0
        %746 = vmatpush.msra.mxu0 0.0
        %747 = vmatpush.msra.mxu0 %v721
        %748 = vmatpush.msra.mxu0 %v720
        %749 = vmatmul.f32.gmra.mxu0 %v725
        %v750 = vpop.f32.mrf.mxu0
        %v751 = vadd.f32 0.0, %v750
        %752 = vmatmul.f32.gmra.mxu0 %v728
        %v753 = vpop.f32.mrf.mxu0
        %v754 = vadd.f32 0.0, %v753
        %755 = vmatmul.f32.gmra.mxu0 %v731
        %v756 = vpop.f32.mrf.mxu0
        %v757 = vadd.f32 0.0, %v756
        %758 = vdwg.mxu0
        %v759 = vadd.f32 %v704, %v751
        %v760 = vadd.f32 %v705, %v754
        %v761 = vadd.f32 %v706, %v757
        %s762 = scalar_lea.vmem %s3, 96
        %v763 = vld [vmem:[%s762] sm:$0xff]
        %v764 = vld [vmem:[%s762 + $0x8] sm:$0xff]
        %v765 = vld [vmem:[%s762 + $0x10] sm:$0xff]
        %766 = vrot.lane.b32.xlu0 %v553, 116
        %v767 = vpop.permute.xlu0 %766
        %768 = vrot.lane.b32.xlu0 %v554, 116
        %v769 = vpop.permute.xlu0 %768
        %770 = vrot.lane.b32.xlu0 %v555, 116
        %v771 = vpop.permute.xlu0 %770
        %772 = vrot.lane.b32.xlu0 %v556, 116
        %v773 = vpop.permute.xlu0 %772
        %vm774 = vcmask 949248
        %v775 = vsel %vm774, %v767, %v769
        %v776 = vsel %vm774, %v771, %v773
        %v780 = vsel %vm581, %v763, 0
        %v783 = vsel %vm581, %v764, 0
        %v786 = vsel %vm581, %v765, 0
        %788 = vmatpush.msra.mxu0 0.0
        %789 = vmatpush.msra.mxu0 0.0
        %790 = vmatpush.msra.mxu0 0.0
        %791 = vmatpush.msra.mxu0 0.0
        %792 = vmatpush.msra.mxu0 0.0
        %793 = vmatpush.msra.mxu0 0.0
        %794 = vmatpush.msra.mxu0 0.0
        %795 = vmatpush.msra.mxu0 0.0
        %796 = vmatpush.msra.mxu0 0.0
        %797 = vmatpush.msra.mxu0 0.0
        %798 = vmatpush.msra.mxu0 0.0
        %799 = vmatpush.msra.mxu0 0.0
        %800 = vmatpush.msra.mxu0 0.0
        %801 = vmatpush.msra.mxu0 0.0
        %802 = vmatpush.msra.mxu0 %v776
        %803 = vmatpush.msra.mxu0 %v775
        %804 = vmatmul.f32.gmra.mxu0 %v780
        %v805 = vpop.f32.mrf.mxu0
        %v806 = vadd.f32 0.0, %v805
        %807 = vmatmul.f32.gmra.mxu0 %v783
        %v808 = vpop.f32.mrf.mxu0
        %v809 = vadd.f32 0.0, %v808
        %810 = vmatmul.f32.gmra.mxu0 %v786
        %v811 = vpop.f32.mrf.mxu0
        %v812 = vadd.f32 0.0, %v811
        %813 = vdwg.mxu0
        %v814 = vadd.f32 %v759, %v806
        %v815 = vadd.f32 %v760, %v809
        %v816 = vadd.f32 %v761, %v812
        %s817 = scalar_lea.vmem %s3, 120
        %v818 = vld [vmem:[%s817] sm:$0xff]
        %v819 = vld [vmem:[%s817 + $0x8] sm:$0xff]
        %v820 = vld [vmem:[%s817 + $0x10] sm:$0xff]
        %821 = vrot.lane.b32.xlu0 %v553, 113
        %v822 = vpop.permute.xlu0 %821
        %823 = vrot.lane.b32.xlu0 %v554, 113
        %v824 = vpop.permute.xlu0 %823
        %825 = vrot.lane.b32.xlu0 %v555, 113
        %v826 = vpop.permute.xlu0 %825
        %827 = vrot.lane.b32.xlu0 %v556, 113
        %v828 = vpop.permute.xlu0 %827
        %vm829 = vcmask 924672
        %v830 = vsel %vm829, %v822, %v824
        %v831 = vsel %vm829, %v826, %v828
        %v835 = vsel %vm581, %v818, 0
        %v838 = vsel %vm581, %v819, 0
        %v841 = vsel %vm581, %v820, 0
        %843 = vmatpush.msra.mxu0 0.0
        %844 = vmatpush.msra.mxu0 0.0
        %845 = vmatpush.msra.mxu0 0.0
        %846 = vmatpush.msra.mxu0 0.0
        %847 = vmatpush.msra.mxu0 0.0
        %848 = vmatpush.msra.mxu0 0.0
        %849 = vmatpush.msra.mxu0 0.0
        %850 = vmatpush.msra.mxu0 0.0
        %851 = vmatpush.msra.mxu0 0.0
        %852 = vmatpush.msra.mxu0 0.0
        %853 = vmatpush.msra.mxu0 0.0
        %854 = vmatpush.msra.mxu0 0.0
        %855 = vmatpush.msra.mxu0 0.0
        %856 = vmatpush.msra.mxu0 0.0
        %857 = vmatpush.msra.mxu0 %v831
        %858 = vmatpush.msra.mxu0 %v830
        %859 = vmatmul.f32.gmra.mxu0 %v835
        %v860 = vpop.f32.mrf.mxu0
        %v861 = vadd.f32 0.0, %v860
        %862 = vmatmul.f32.gmra.mxu0 %v838
        %v863 = vpop.f32.mrf.mxu0
        %v864 = vadd.f32 0.0, %v863
        %865 = vmatmul.f32.gmra.mxu0 %v841
        %v866 = vpop.f32.mrf.mxu0
        %v867 = vadd.f32 0.0, %v866
        %868 = vdwg.mxu0
        %v869 = vadd.f32 %v814, %v861
        %v870 = vadd.f32 %v815, %v864
        %v871 = vadd.f32 %v816, %v867
        %s872 = scalar_lea.vmem %s3, 144
        %v873 = vld [vmem:[%s872] sm:$0xff]
        %v874 = vld [vmem:[%s872 + $0x8] sm:$0xff]
        %v875 = vld [vmem:[%s872 + $0x10] sm:$0xff]
        %876 = vrot.lane.b32.xlu0 %v553, 110
        %v877 = vpop.permute.xlu0 %876
        %878 = vrot.lane.b32.xlu0 %v554, 110
        %v879 = vpop.permute.xlu0 %878
        %880 = vrot.lane.b32.xlu0 %v555, 110
        %v881 = vpop.permute.xlu0 %880
        %882 = vrot.lane.b32.xlu0 %v556, 110
        %v883 = vpop.permute.xlu0 %882
        %vm884 = vcmask 900096
        %v885 = vsel %vm884, %v877, %v879
        %v886 = vsel %vm884, %v881, %v883
        %v890 = vsel %vm581, %v873, 0
        %v893 = vsel %vm581, %v874, 0
        %v896 = vsel %vm581, %v875, 0
        %898 = vmatpush.msra.mxu0 0.0
        %899 = vmatpush.msra.mxu0 0.0
        %900 = vmatpush.msra.mxu0 0.0
        %901 = vmatpush.msra.mxu0 0.0
        %902 = vmatpush.msra.mxu0 0.0
        %903 = vmatpush.msra.mxu0 0.0
        %904 = vmatpush.msra.mxu0 0.0
        %905 = vmatpush.msra.mxu0 0.0
        %906 = vmatpush.msra.mxu0 0.0
        %907 = vmatpush.msra.mxu0 0.0
        %908 = vmatpush.msra.mxu0 0.0
        %909 = vmatpush.msra.mxu0 0.0
        %910 = vmatpush.msra.mxu0 0.0
        %911 = vmatpush.msra.mxu0 0.0
        %912 = vmatpush.msra.mxu0 %v886
        %913 = vmatpush.msra.mxu0 %v885
        %914 = vmatmul.f32.gmra.mxu0 %v890
        %v915 = vpop.f32.mrf.mxu0
        %v916 = vadd.f32 0.0, %v915
        %917 = vmatmul.f32.gmra.mxu0 %v893
        %v918 = vpop.f32.mrf.mxu0
        %v919 = vadd.f32 0.0, %v918
        %920 = vmatmul.f32.gmra.mxu0 %v896
        %v921 = vpop.f32.mrf.mxu0
        %v922 = vadd.f32 0.0, %v921
        %923 = vdwg.mxu0
        %v924 = vadd.f32 %v869, %v916
        %v925 = vadd.f32 %v870, %v919
        %v926 = vadd.f32 %v871, %v922
        %v927 = vld [vmem:[%s4] sm:$0xff]
        %v928 = vld [vmem:[%s4 + $0x8] sm:$0xff]
        %v929 = vld [vmem:[%s4 + $0x10] sm:$0xff]
        %931 = vset.pattern.permute.xlu0 0
        %932 = vperm.xlu0 %931, %v927
        %v933 = vpop.permute.xlu0 %932
        %936 = vset.pattern.permute.xlu0 0
        %937 = vperm.xlu0 %936, %v928
        %v938 = vpop.permute.xlu0 %937
        %941 = vset.pattern.permute.xlu0 0
        %942 = vperm.xlu0 %941, %v929
        %v943 = vpop.permute.xlu0 %942
        %v945 = vadd.f32 %v924, %v933
        %v946 = vadd.f32 %v925, %v938
        %v947 = vadd.f32 %v926, %v943
        %v948 = vld [vmem:[%s441] sm:$0xff]
        %v949 = vld [vmem:[%s441 + $0x8] sm:$0xff]
        %v950 = vld [vmem:[%s441 + $0x10] sm:$0xff]
        %v951 = vadd.f32 %v945, %v948
        %v952 = vadd.f32 %v946, %v949
        %v953 = vadd.f32 %v947, %v950
        %954 = vst [vmem:[%s481] sm:$0xff] %v951
        %955 = vst [vmem:[%s481 + $0x8] sm:$0xff] %v952
        %956 = vst [vmem:[%s481 + $0x10] sm:$0xff] %v953
        %s957 = sand.u32 %s214, 1
        %s958 = scalar_lea.sflag [#allocation5], %s957
        %s959 = sand.u32 %s214, 1
        %s960 = smul.addr %s959, 24
        %s961 = scalar_lea.vmem [#allocation9], %s960
        // Predicated region
        $region129: #{tpu_custom_call.1} parent=111 // pred_check
          %p962 = pneg %p224
        $region130: #{tpu_custom_call.1} parent=111 // pred_check_branch
          %964 = sbr.rel (%p962) target = $region132
        $region131: #{tpu_custom_call.1} parent=111 // pred_region
          %966 = vsyncadd %s958, 0
          %s967 = smul.addr %s30, 9
          %s968 = sadd.s32 %s31, %s967
          %s969 = smul.addr %s968, 8
          %s970 = scalar_lea.hbm %s6, %s969
          %s971 = sshll.u32 %s961, 4
          %s972 = int_to_ptr.vmem [resolvable:$true] %s971
          %s973 = sshll.u32 %s970, 4
          %s974 = int_to_ptr.hbm [resolvable:$true] %s973
          %979 = dma.vmem_to_hbm [thread:$0]  %s972, 384, %s974, %s958, 128, 384, 8
        $region132: #{tpu_custom_call.1} parent=111 // pred_fallthru
          _
      $region112: #{tpu_custom_call.1} parent=5 // pred_fallthru
        _
      %p980 = scmp.le.s32.totalorder 2, %s21
      // Predicated region
      $region133: #{tpu_custom_call.1} parent=5 // pred_check
        %p981 = pneg %p980
      $region134: #{tpu_custom_call.1} parent=5 // pred_check_branch
        %983 = sbr.rel (%p981) target = $region136
      $region135: #{tpu_custom_call.1} parent=5 // pred_region
        %s984 = ssub.s32 %s21, 2
        // Predicated region
        $region137: #{tpu_custom_call.1} parent=135 // pred_check
          %p985 = pneg %p230
        $region138: #{tpu_custom_call.1} parent=135 // pred_check_branch
          %987 = sbr.rel (%p985) target = $region140
        $region139: #{tpu_custom_call.1} parent=135 // pred_region
          %s988 = sand.u32 %s215, 1
          %s989 = scalar_lea.sflag [#allocation5], %s988
          %s990 = sand.u32 %s215, 1
          %s991 = smul.addr %s990, 24
          %s992 = scalar_lea.vmem [#allocation9], %s991
          %994 = dma.done %s989, 384
        $region140: #{tpu_custom_call.1} parent=135 // pred_fallthru
          _
      $region136: #{tpu_custom_call.1} parent=5 // pred_fallthru
        _
    $region6: #{tpu_custom_call.1} parent=1 // loop_footer
      %s25 = sadd.s32 1, %s21
    $region7: #{tpu_custom_call.1} parent=1 // loop_footer_branch
      %20 = sbr.rel target = $region3
    $region8: #{tpu_custom_call.1} parent=1 // loop_exit
      _
    %995 = vsyncpa [#allocation4], 1
    %s996 = scalar_lea.sflag [#allocation4], 1
    %997 = vsyncpa %s996, 1
    %998 = vsyncpa [#allocation7], 1
    %s999 = scalar_lea.sflag [#allocation7], 1
    %1000 = vsyncpa %s999, 1
    %1001 = vsyncpa [#allocation5], 1
    %s1002 = scalar_lea.sflag [#allocation5], 1
    %1003 = vsyncpa %s1002, 1

</llo_original>
